<compile_context>
chip_gen: v5e
topology: v5e:2x2
jax: 0.10.0
libtpu: 0.0.40
codegen_flags: <defaults>
</compile_context>

<pallas_src>
import math
import functools

import jax
import jax.numpy as jnp
from jax.experimental import pallas as pl
from jax.experimental.pallas import tpu as pltpu

SELU_ALPHA = 1.6732632423543772
SELU_SCALE = 1.0507009873554805
LN_EPS = 1e-5

# Set to jnp.bfloat16 on v6e / v7x for ~2x MXU throughput (small drift).
MATMUL_DTYPE = jnp.float32


# ----------------------------- kernel helpers -------------------------------
def _mm(a, b):
    return jnp.dot(a.astype(MATMUL_DTYPE), b.astype(MATMUL_DTYPE),
                   preferred_element_type=jnp.float32)


def _qkt(q, k):
    # (N, d) x (N, d) -> (N, N), contracting the last dim of both operands.
    return jax.lax.dot_general(
        q.astype(MATMUL_DTYPE), k.astype(MATMUL_DTYPE),
        (((1,), (1,)), ((), ())),
        preferred_element_type=jnp.float32)


def _selu(x):
    neg = SELU_ALPHA * (jnp.exp(jnp.minimum(x, 0.0)) - 1.0)
    return SELU_SCALE * jnp.where(x > 0.0, x, neg)


def _layernorm(x, gamma, beta):
    mean = jnp.mean(x, axis=-1, keepdims=True)
    var = jnp.mean((x - mean) * (x - mean), axis=-1, keepdims=True)
    inv = jax.lax.rsqrt(var + LN_EPS)
    return (x - mean) * inv * gamma + beta


# ----------------------------- fused Pallas kernel ---------------------------
def fused_forward_kernel(
    # activations
    x_ref, temb_ref,
    # encoder
    enc_w1_ref, enc_b1_ref, enc_w2_ref, enc_b2_ref,
    # transformer layers, stacked along a leading (num_layers) axis
    wqkv_ref, bqkv_ref, wo_ref, bo_ref,
    l1w_ref, l1b_ref, l2w_ref, l2b_ref,
    n1g_ref, n1b_ref, n2g_ref, n2b_ref,
    fw_ref, fb_ref,
    # decoder
    dec_w1_ref, dec_b1_ref, dec_w2_ref, dec_b2_ref,
    # output
    o_ref,
    # scratch: persistent (N, d_model) src buffer
    src_scratch,
    *, num_layers, nhead, head_dim, head_pad, embed_dim,
):
    # ---------------- Encoder: Linear -> SELU -> Linear ----------------
    h = _mm(x_ref[...], enc_w1_ref[...]) + enc_b1_ref[...]
    h = _selu(h)
    encoded = _mm(h, enc_w2_ref[...]) + enc_b2_ref[...]

    # Time-embedding columns written once; persist across layers.
    src_scratch[:, embed_dim:] = temb_ref[...]

    scale = 1.0 / math.sqrt(head_dim)
    k_base = nhead * head_pad
    v_base = 2 * nhead * head_pad

    for li in range(num_layers):                  # static unroll over layers
        src_scratch[:, :embed_dim] = encoded
        src = src_scratch[...]                    # (N, d_model)

        # --- multi-head self-attention, fused QKV in 128-lane padded layout ---
        qkv = _mm(src, wqkv_ref[li]) + bqkv_ref[li]   # (N, 3*nhead*head_pad)

        ctx_heads = []
        for hh in range(nhead):
            qh = qkv[:, hh * head_pad:(hh + 1) * head_pad] * scale   # aligned
            kh = qkv[:, k_base + hh * head_pad:k_base + (hh + 1) * head_pad]
            vh = qkv[:, v_base + hh * head_pad:v_base + (hh + 1) * head_pad]
            sc = _qkt(qh, kh)                     # (N, N); padded cols add 0
            sc = sc - jnp.max(sc, axis=-1, keepdims=True)
            p = jnp.exp(sc)
            p = p * pl.reciprocal(jnp.sum(p, axis=-1, keepdims=True),
                                  approx=True)
            ctx_heads.append(_mm(p, vh))          # (N, head_pad)
        ctx = jnp.concatenate(ctx_heads, axis=-1)  # 128-aligned concat
        attn = _mm(ctx, wo_ref[li]) + bo_ref[li]   # single merged out-proj

        # --- residual + norm1 (dropout == identity at inference) ---
        y = _layernorm(src + attn, n1g_ref[li], n1b_ref[li])

        # --- feed-forward: linear2(relu(linear1(y))) ---
        ff = _mm(y, l1w_ref[li]) + l1b_ref[li]
        ff = jnp.maximum(ff, 0.0)
        ff = _mm(ff, l2w_ref[li]) + l2b_ref[li]

        # --- residual + norm2, then final projection back to embed_dim ---
        y = _layernorm(y + ff, n2g_ref[li], n2b_ref[li])
        encoded = _mm(y, fw_ref[li]) + fb_ref[li]  # (N, embed_dim)

    # ---------------- Decoder: Linear -> SELU -> Linear ----------------
    d = _mm(encoded, dec_w1_ref[...]) + dec_b1_ref[...]
    d = _selu(d)
    o_ref[...] = _mm(d, dec_w2_ref[...]) + dec_b2_ref[...]


# ----------------------------- wrapper ---------------------------------------
def sinusoidal_pos_emb(t, dim, theta=10000.0):
    # Tiny (N, time_dim) elementwise table; computed in plain JAX (glue).
    half = dim // 2
    scale = math.log(theta) / (half - 1)
    freqs = jnp.exp(jnp.arange(half, dtype=jnp.float32) * (-scale))
    emb = t[:, None] * freqs[None, :]
    return jnp.concatenate([jnp.sin(emb), jnp.cos(emb)], axis=-1)


def _head_pad_of(head_dim):
    return max(128, ((head_dim + 127) // 128) * 128)


def transformer_autoencoder_forward(params, t, x, *, time_dim, embed_dim,
                                    n_heads):
    N = x.shape[0]
    d_model = embed_dim + time_dim
    head_dim = d_model // n_heads
    head_pad = _head_pad_of(head_dim)
    num_layers = params["wqkv"].shape[0]
    output_dim = params["dec_w2"].shape[1]

    # PyTorch tr=False path: a scalar / length-1 t is repeated to x.shape[0]
    # (a length-N t would blow up to N*N under torch .repeat and break the
    # concat, so only the scalar case is meaningful here).
    t = jnp.broadcast_to(jnp.reshape(t, (-1,))[:1], (N,))
    t_rounded = jnp.round(t * 100.0)
    time_emb = sinusoidal_pos_emb(t_rounded, time_dim)   # (N, time_dim)

    kernel = functools.partial(
        fused_forward_kernel,
        num_layers=num_layers, nhead=n_heads, head_dim=head_dim,
        head_pad=head_pad, embed_dim=embed_dim)

    args = (
        x, time_emb,
        params["enc_w1"], params["enc_b1"], params["enc_w2"], params["enc_b2"],
        params["wqkv"], params["bqkv"], params["wo"], params["bo"],
        params["l1w"], params["l1b"], params["l2w"], params["l2b"],
        params["n1g"], params["n1b"], params["n2g"], params["n2b"],
        params["fw"], params["fb"],
        params["dec_w1"], params["dec_b1"], params["dec_w2"], params["dec_b2"],
    )
    vmem = pl.BlockSpec(memory_space=pltpu.MemorySpace.VMEM)
    return pl.pallas_call(
        kernel,
        out_shape=jax.ShapeDtypeStruct((N, output_dim), jnp.float32),
        in_specs=[vmem] * len(args),
        out_specs=vmem,
        scratch_shapes=[pltpu.VMEM((N, d_model), jnp.float32)],
    )(*args)


# ----------------------------- parameter construction ------------------------
def _linear(key, fan_in, fan_out):
    kw, kb = jax.random.split(key)
    bound = 1.0 / math.sqrt(fan_in)
    w = jax.random.uniform(kw, (fan_in, fan_out), jnp.float32, -bound, bound)
    b = jax.random.uniform(kb, (1, fan_out), jnp.float32, -bound, bound)
    return w, b


def _pad_heads_out(w, b, nhead, head_dim, head_pad):
    """Re-lay output columns so head h occupies lanes [h*head_pad, ...+head_dim);
    padding columns are zero => math is unchanged."""
    fan_in = w.shape[0]
    wp = jnp.zeros((fan_in, nhead * head_pad), jnp.float32)
    bp = jnp.zeros((1, nhead * head_pad), jnp.float32)
    for h in range(nhead):
        wp = wp.at[:, h * head_pad:h * head_pad + head_dim].set(
            w[:, h * head_dim:(h + 1) * head_dim])
        bp = bp.at[:, h * head_pad:h * head_pad + head_dim].set(
            b[:, h * head_dim:(h + 1) * head_dim])
    return wp, bp


def _pad_heads_in(w, nhead, head_dim, head_pad):
    """Re-lay input rows of the out-projection to match the padded ctx layout."""
    fan_out = w.shape[1]
    wp = jnp.zeros((nhead * head_pad, fan_out), jnp.float32)
    for h in range(nhead):
        wp = wp.at[h * head_pad:h * head_pad + head_dim, :].set(
            w[h * head_dim:(h + 1) * head_dim, :])
    return wp


def init_params(key, input_dim, embed_dim, time_dim, num_layers, n_heads,
                output_dim):
    d_model = embed_dim + time_dim
    head_dim = d_model // n_heads
    head_pad = _head_pad_of(head_dim)

    keys = jax.random.split(key, 4 + num_layers)
    enc_w1, enc_b1 = _linear(keys[0], input_dim, embed_dim)
    enc_w2, enc_b2 = _linear(keys[1], embed_dim, embed_dim)
    dec_w1, dec_b1 = _linear(keys[2], embed_dim, embed_dim)
    dec_w2, dec_b2 = _linear(keys[3], embed_dim, output_dim)

    names = ("wqkv", "bqkv", "wo", "bo",
             "l1w", "l1b", "l2w", "l2b", "n1g", "n1b", "n2g", "n2b",
             "fw", "fb")
    stacked = {k: [] for k in names}
    for li in range(num_layers):
        lk = jax.random.split(keys[4 + li], 7)
        wq, bq = _linear(lk[0], d_model, d_model)
        wk, bk = _linear(lk[1], d_model, d_model)
        wv, bv = _linear(lk[2], d_model, d_model)
        wo, bo = _linear(lk[3], d_model, d_model)
        l1w, l1b = _linear(lk[4], d_model, d_model)
        l2w, l2b = _linear(lk[5], d_model, d_model)
        fw, fb = _linear(lk[6], d_model, embed_dim)

        wq_p, bq_p = _pad_heads_out(wq, bq, n_heads, head_dim, head_pad)
        wk_p, bk_p = _pad_heads_out(wk, bk, n_heads, head_dim, head_pad)
        wv_p, bv_p = _pad_heads_out(wv, bv, n_heads, head_dim, head_pad)
        wqkv = jnp.concatenate([wq_p, wk_p, wv_p], axis=1)
        bqkv = jnp.concatenate([bq_p, bk_p, bv_p], axis=1)
        wo_p = _pad_heads_in(wo, n_heads, head_dim, head_pad)

        vals = dict(wqkv=wqkv, bqkv=bqkv, wo=wo_p, bo=bo,
                    l1w=l1w, l1b=l1b, l2w=l2w, l2b=l2b,
                    n1g=jnp.ones((1, d_model), jnp.float32),
                    n1b=jnp.zeros((1, d_model), jnp.float32),
                    n2g=jnp.ones((1, d_model), jnp.float32),
                    n2b=jnp.zeros((1, d_model), jnp.float32),
                    fw=fw, fb=fb)
        for k_, v_ in vals.items():
            stacked[k_].append(v_)

    params = dict(
        enc_w1=enc_w1, enc_b1=enc_b1, enc_w2=enc_w2, enc_b2=enc_b2,
        dec_w1=dec_w1, dec_b1=dec_b1, dec_w2=dec_w2, dec_b2=dec_b2,
    )
    for k_, lst in stacked.items():
        params[k_] = jnp.stack(lst, axis=0)
    return params


# ----------------------------- pure-JAX reference -----------------------------
def _ref_mm(a, b):
    return jnp.dot(a, b, precision=jax.lax.Precision.HIGHEST)


def reference_forward(params, t, x, *, time_dim, embed_dim, n_heads):
    N = x.shape[0]
    d_model = embed_dim + time_dim
    head_dim = d_model // n_heads
    head_pad = _head_pad_of(head_dim)
    num_layers = params["wqkv"].shape[0]

    t = jnp.broadcast_to(jnp.reshape(t, (-1,))[:1], (N,))
    temb = sinusoidal_pos_emb(jnp.round(t * 100.0), time_dim)

    enc = _selu(_ref_mm(x, params["enc_w1"]) + params["enc_b1"])
    enc = _ref_mm(enc, params["enc_w2"]) + params["enc_b2"]

    k_base = n_heads * head_pad
    v_base = 2 * n_heads * head_pad
    for li in range(num_layers):
        src = jnp.concatenate([enc, temb], axis=-1)
        qkv = _ref_mm(src, params["wqkv"][li]) + params["bqkv"][li]
        ctx = []
        for hh in range(n_heads):
            qh = qkv[:, hh * head_pad:(hh + 1) * head_pad] / math.sqrt(head_dim)
            kh = qkv[:, k_base + hh * head_pad:k_base + (hh + 1) * head_pad]
            vh = qkv[:, v_base + hh * head_pad:v_base + (hh + 1) * head_pad]
            p = jax.nn.softmax(_ref_mm(qh, kh.T), axis=-1)
            ctx.append(_ref_mm(p, vh))
        attn = _ref_mm(jnp.concatenate(ctx, -1), params["wo"][li]) + params["bo"][li]
        y = _layernorm(src + attn, params["n1g"][li], params["n1b"][li])
        ff = jnp.maximum(_ref_mm(y, params["l1w"][li]) + params["l1b"][li], 0.0)
        ff = _ref_mm(ff, params["l2w"][li]) + params["l2b"][li]
        y = _layernorm(y + ff, params["n2g"][li], params["n2b"][li])
        enc = _ref_mm(y, params["fw"][li]) + params["fb"][li]

    d = _selu(_ref_mm(enc, params["dec_w1"]) + params["dec_b1"])
    return _ref_mm(d, params["dec_w2"]) + params["dec_b2"]


# ----------------------------- main ------------------------------------------
if __name__ == "__main__":
    N = 8               # rows == unbatched MHA sequence length
    input_dim = 16
    embed_dim = 32
    time_dim = 16       # d_model = 48
    n_heads = 4         # head_dim = 12
    num_layers = 2
    output_dim = 16

    key = jax.random.PRNGKey(0)
    kx, kp = jax.random.split(key)
    x = jax.random.normal(kx, (N, input_dim), jnp.float32)
    t = jnp.float32(0.37)   # scalar timestep, repeated to batch inside forward

    params = init_params(kp, input_dim, embed_dim, time_dim, num_layers,
                         n_heads, output_dim)

    fwd = jax.jit(functools.partial(
        transformer_autoencoder_forward,
        time_dim=time_dim, embed_dim=embed_dim, n_heads=n_heads))

    out = fwd(params, t, x)
    out = jax.block_until_ready(out)

    ref = reference_forward(params, t, x, time_dim=time_dim,
                            embed_dim=embed_dim, n_heads=n_heads)

    assert out.shape == (N, output_dim), out.shape
    assert bool(jnp.all(jnp.isfinite(out)))
    assert bool(jnp.allclose(out, ref, atol=5e-3, rtol=5e-3)), \
        float(jnp.max(jnp.abs(out - ref)))
    print("KERNEL_OK")
</pallas_src>

<mosaic_0001>
module attributes {stable_mosaic.version = 11 : i64} {
  func.func @fused_forward_kernel(%arg0: memref<8x16xf32, #tpu.memory_space<vmem>>, %arg1: memref<8x16xf32, #tpu.memory_space<vmem>>, %arg2: memref<16x32xf32, #tpu.memory_space<vmem>>, %arg3: memref<1x32xf32, #tpu.memory_space<vmem>>, %arg4: memref<32x32xf32, #tpu.memory_space<vmem>>, %arg5: memref<1x32xf32, #tpu.memory_space<vmem>>, %arg6: memref<2x48x1536xf32, #tpu.memory_space<vmem>>, %arg7: memref<2x1x1536xf32, #tpu.memory_space<vmem>>, %arg8: memref<2x512x48xf32, #tpu.memory_space<vmem>>, %arg9: memref<2x1x48xf32, #tpu.memory_space<vmem>>, %arg10: memref<2x48x48xf32, #tpu.memory_space<vmem>>, %arg11: memref<2x1x48xf32, #tpu.memory_space<vmem>>, %arg12: memref<2x48x48xf32, #tpu.memory_space<vmem>>, %arg13: memref<2x1x48xf32, #tpu.memory_space<vmem>>, %arg14: memref<2x1x48xf32, #tpu.memory_space<vmem>>, %arg15: memref<2x1x48xf32, #tpu.memory_space<vmem>>, %arg16: memref<2x1x48xf32, #tpu.memory_space<vmem>>, %arg17: memref<2x1x48xf32, #tpu.memory_space<vmem>>, %arg18: memref<2x48x32xf32, #tpu.memory_space<vmem>>, %arg19: memref<2x1x32xf32, #tpu.memory_space<vmem>>, %arg20: memref<32x32xf32, #tpu.memory_space<vmem>>, %arg21: memref<1x32xf32, #tpu.memory_space<vmem>>, %arg22: memref<32x16xf32, #tpu.memory_space<vmem>>, %arg23: memref<1x16xf32, #tpu.memory_space<vmem>>, %arg24: memref<8x16xf32, #tpu.memory_space<vmem>>, %arg25: memref<8x48xf32, #tpu.memory_space<vmem>>) attributes {dimension_semantics = [], scalar_prefetch = 0 : i64, scratch_operands = 1 : i64, tpu.core_type = #tpu.core_type<tc>} {
    %c0 = arith.constant 0 : index
    %c0_0 = arith.constant 0 : index
    %0 = vector.load %arg0[%c0, %c0_0] : memref<8x16xf32, #tpu.memory_space<vmem>>, vector<8x16xf32>
    %c0_1 = arith.constant 0 : index
    %c0_2 = arith.constant 0 : index
    %1 = vector.load %arg2[%c0_1, %c0_2] : memref<16x32xf32, #tpu.memory_space<vmem>>, vector<16x32xf32>
    %cst = arith.constant dense<0.000000e+00> : vector<8x32xf32>
    %2 = tpu.matmul %0, %1, %cst {dimension_numbers = #tpu.dot_dimension_numbers<[1], [0], [0], [1], [0, 0, 1, 1], [], []>} : vector<8x16xf32>, vector<16x32xf32>, vector<8x32xf32> -> vector<8x32xf32>
    %c0_3 = arith.constant 0 : index
    %c0_4 = arith.constant 0 : index
    %3 = vector.load %arg3[%c0_3, %c0_4] : memref<1x32xf32, #tpu.memory_space<vmem>>, vector<1x32xf32>
    %4 = vector.broadcast %3 : vector<1x32xf32> to vector<8x32xf32>
    %5 = arith.addf %2, %4 : vector<8x32xf32>
    %cst_5 = arith.constant 0.000000e+00 : f32
    %6 = vector.broadcast %cst_5 : f32 to vector<8x32xf32>
    %7 = arith.minimumf %5, %6 : vector<8x32xf32>
    %8 = math.exp %7 : vector<8x32xf32>
    %cst_6 = arith.constant 1.000000e+00 : f32
    %9 = vector.broadcast %cst_6 : f32 to vector<8x32xf32>
    %10 = arith.subf %8, %9 : vector<8x32xf32>
    %cst_7 = arith.constant 1.67326319 : f32
    %11 = vector.broadcast %cst_7 : f32 to vector<8x32xf32>
    %12 = arith.mulf %11, %10 : vector<8x32xf32>
    %cst_8 = arith.constant 0.000000e+00 : f32
    %13 = vector.broadcast %cst_8 : f32 to vector<8x32xf32>
    %14 = arith.cmpf ogt, %5, %13 : vector<8x32xf32>
    %15 = arith.select %14, %5, %12 : vector<8x32xi1>, vector<8x32xf32>
    %cst_9 = arith.constant 1.05070102 : f32
    %16 = vector.broadcast %cst_9 : f32 to vector<8x32xf32>
    %17 = arith.mulf %16, %15 : vector<8x32xf32>
    %c0_10 = arith.constant 0 : index
    %c0_11 = arith.constant 0 : index
    %18 = vector.load %arg4[%c0_10, %c0_11] : memref<32x32xf32, #tpu.memory_space<vmem>>, vector<32x32xf32>
    %cst_12 = arith.constant dense<0.000000e+00> : vector<8x32xf32>
    %19 = tpu.matmul %17, %18, %cst_12 {dimension_numbers = #tpu.dot_dimension_numbers<[1], [0], [0], [1], [0, 0, 1, 1], [], []>} : vector<8x32xf32>, vector<32x32xf32>, vector<8x32xf32> -> vector<8x32xf32>
    %c0_13 = arith.constant 0 : index
    %c0_14 = arith.constant 0 : index
    %20 = vector.load %arg5[%c0_13, %c0_14] : memref<1x32xf32, #tpu.memory_space<vmem>>, vector<1x32xf32>
    %21 = vector.broadcast %20 : vector<1x32xf32> to vector<8x32xf32>
    %22 = arith.addf %19, %21 : vector<8x32xf32>
    %c0_15 = arith.constant 0 : index
    %c0_16 = arith.constant 0 : index
    %23 = vector.load %arg1[%c0_15, %c0_16] : memref<8x16xf32, #tpu.memory_space<vmem>>, vector<8x16xf32>
    %c0_17 = arith.constant 0 : index
    %c32 = arith.constant 32 : index
    %24 = vector.load %arg25[%c0_17, %c32] : memref<8x48xf32, #tpu.memory_space<vmem>>, vector<8x16xf32>
    tpu.vector_store %arg25[%c0_17, %c32], %23 {strides = array<i32>} : memref<8x48xf32, #tpu.memory_space<vmem>>, vector<8x16xf32>,
    %c0_18 = arith.constant 0 : index
    %c0_19 = arith.constant 0 : index
    %25 = vector.load %arg25[%c0_18, %c0_19] : memref<8x48xf32, #tpu.memory_space<vmem>>, vector<8x32xf32>
    tpu.vector_store %arg25[%c0_18, %c0_19], %22 {strides = array<i32>} : memref<8x48xf32, #tpu.memory_space<vmem>>, vector<8x32xf32>,
    %c0_20 = arith.constant 0 : index
    %c0_21 = arith.constant 0 : index
    %26 = vector.load %arg25[%c0_20, %c0_21] : memref<8x48xf32, #tpu.memory_space<vmem>>, vector<8x48xf32>
    %c0_22 = arith.constant 0 : index
    %c0_23 = arith.constant 0 : index
    %c0_24 = arith.constant 0 : index
    %27 = vector.load %arg6[%c0_22, %c0_23, %c0_24] : memref<2x48x1536xf32, #tpu.memory_space<vmem>>, vector<1x48x1536xf32>
    %28 = vector.shape_cast %27 : vector<1x48x1536xf32> to vector<48x1536xf32>
    %cst_25 = arith.constant dense<0.000000e+00> : vector<8x1536xf32>
    %29 = tpu.matmul %26, %28, %cst_25 {dimension_numbers = #tpu.dot_dimension_numbers<[1], [0], [0], [1], [0, 0, 1, 1], [], []>} : vector<8x48xf32>, vector<48x1536xf32>, vector<8x1536xf32> -> vector<8x1536xf32>
    %c0_26 = arith.constant 0 : index
    %c0_27 = arith.constant 0 : index
    %c0_28 = arith.constant 0 : index
    %30 = vector.load %arg7[%c0_26, %c0_27, %c0_28] : memref<2x1x1536xf32, #tpu.memory_space<vmem>>, vector<1x1x1536xf32>
    %31 = vector.shape_cast %30 : vector<1x1x1536xf32> to vector<1x1536xf32>
    %32 = vector.broadcast %31 : vector<1x1536xf32> to vector<8x1536xf32>
    %33 = arith.addf %29, %32 : vector<8x1536xf32>
    %34 = vector.extract_strided_slice %33 {offsets = [0, 0], sizes = [8, 128], strides = [1, 1]} : vector<8x1536xf32> to vector<8x128xf32>
    %cst_29 = arith.constant 0.288675129 : f32
    %35 = vector.broadcast %cst_29 : f32 to vector<8x128xf32>
    %36 = arith.mulf %34, %35 : vector<8x128xf32>
    %37 = vector.extract_strided_slice %33 {offsets = [0, 512], sizes = [8, 128], strides = [1, 1]} : vector<8x1536xf32> to vector<8x128xf32>
    %38 = vector.extract_strided_slice %33 {offsets = [0, 1024], sizes = [8, 128], strides = [1, 1]} : vector<8x1536xf32> to vector<8x128xf32>
    %cst_30 = arith.constant dense<0.000000e+00> : vector<8x8xf32>
    %39 = tpu.matmul %36, %37, %cst_30 {dimension_numbers = #tpu.dot_dimension_numbers<[1], [1], [0], [0], [0, 0, 1, 0], [], []>} : vector<8x128xf32>, vector<8x128xf32>, vector<8x8xf32> -> vector<8x8xf32>
    %cst_31 = arith.constant dense<0xFF800000> : vector<8xf32>
    %40 = vector.multi_reduction <maximumf>, %39, %cst_31 [1] : vector<8x8xf32> to vector<8xf32>
    %41 = vector.shape_cast %40 : vector<8xf32> to vector<8x1xf32>
    %42 = vector.broadcast %41 : vector<8x1xf32> to vector<8x8xf32>
    %43 = arith.subf %39, %42 : vector<8x8xf32>
    %44 = math.exp %43 : vector<8x8xf32>
    %cst_32 = arith.constant dense<0.000000e+00> : vector<8xf32>
    %45 = vector.multi_reduction <add>, %44, %cst_32 [1] : vector<8x8xf32> to vector<8xf32>
    %46 = vector.shape_cast %45 : vector<8xf32> to vector<8x1xf32>
    %47 = tpu.reciprocal %46 {approx = true} : vector<8x1xf32> -> vector<8x1xf32>
    %48 = vector.broadcast %47 : vector<8x1xf32> to vector<8x8xf32>
    %49 = arith.mulf %44, %48 : vector<8x8xf32>
    %cst_33 = arith.constant dense<0.000000e+00> : vector<8x128xf32>
    %50 = tpu.matmul %49, %38, %cst_33 {dimension_numbers = #tpu.dot_dimension_numbers<[1], [0], [0], [1], [0, 0, 1, 1], [], []>} : vector<8x8xf32>, vector<8x128xf32>, vector<8x128xf32> -> vector<8x128xf32>
    %51 = vector.extract_strided_slice %33 {offsets = [0, 128], sizes = [8, 128], strides = [1, 1]} : vector<8x1536xf32> to vector<8x128xf32>
    %cst_34 = arith.constant 0.288675129 : f32
    %52 = vector.broadcast %cst_34 : f32 to vector<8x128xf32>
    %53 = arith.mulf %51, %52 : vector<8x128xf32>
    %54 = vector.extract_strided_slice %33 {offsets = [0, 640], sizes = [8, 128], strides = [1, 1]} : vector<8x1536xf32> to vector<8x128xf32>
    %55 = vector.extract_strided_slice %33 {offsets = [0, 1152], sizes = [8, 128], strides = [1, 1]} : vector<8x1536xf32> to vector<8x128xf32>
    %cst_35 = arith.constant dense<0.000000e+00> : vector<8x8xf32>
    %56 = tpu.matmul %53, %54, %cst_35 {dimension_numbers = #tpu.dot_dimension_numbers<[1], [1], [0], [0], [0, 0, 1, 0], [], []>} : vector<8x128xf32>, vector<8x128xf32>, vector<8x8xf32> -> vector<8x8xf32>
    %cst_36 = arith.constant dense<0xFF800000> : vector<8xf32>
    %57 = vector.multi_reduction <maximumf>, %56, %cst_36 [1] : vector<8x8xf32> to vector<8xf32>
    %58 = vector.shape_cast %57 : vector<8xf32> to vector<8x1xf32>
    %59 = vector.broadcast %58 : vector<8x1xf32> to vector<8x8xf32>
    %60 = arith.subf %56, %59 : vector<8x8xf32>
    %61 = math.exp %60 : vector<8x8xf32>
    %cst_37 = arith.constant dense<0.000000e+00> : vector<8xf32>
    %62 = vector.multi_reduction <add>, %61, %cst_37 [1] : vector<8x8xf32> to vector<8xf32>
    %63 = vector.shape_cast %62 : vector<8xf32> to vector<8x1xf32>
    %64 = tpu.reciprocal %63 {approx = true} : vector<8x1xf32> -> vector<8x1xf32>
    %65 = vector.broadcast %64 : vector<8x1xf32> to vector<8x8xf32>
    %66 = arith.mulf %61, %65 : vector<8x8xf32>
    %cst_38 = arith.constant dense<0.000000e+00> : vector<8x128xf32>
    %67 = tpu.matmul %66, %55, %cst_38 {dimension_numbers = #tpu.dot_dimension_numbers<[1], [0], [0], [1], [0, 0, 1, 1], [], []>} : vector<8x8xf32>, vector<8x128xf32>, vector<8x128xf32> -> vector<8x128xf32>
    %68 = vector.extract_strided_slice %33 {offsets = [0, 256], sizes = [8, 128], strides = [1, 1]} : vector<8x1536xf32> to vector<8x128xf32>
    %cst_39 = arith.constant 0.288675129 : f32
    %69 = vector.broadcast %cst_39 : f32 to vector<8x128xf32>
    %70 = arith.mulf %68, %69 : vector<8x128xf32>
    %71 = vector.extract_strided_slice %33 {offsets = [0, 768], sizes = [8, 128], strides = [1, 1]} : vector<8x1536xf32> to vector<8x128xf32>
    %72 = vector.extract_strided_slice %33 {offsets = [0, 1280], sizes = [8, 128], strides = [1, 1]} : vector<8x1536xf32> to vector<8x128xf32>
    %cst_40 = arith.constant dense<0.000000e+00> : vector<8x8xf32>
    %73 = tpu.matmul %70, %71, %cst_40 {dimension_numbers = #tpu.dot_dimension_numbers<[1], [1], [0], [0], [0, 0, 1, 0], [], []>} : vector<8x128xf32>, vector<8x128xf32>, vector<8x8xf32> -> vector<8x8xf32>
    %cst_41 = arith.constant dense<0xFF800000> : vector<8xf32>
    %74 = vector.multi_reduction <maximumf>, %73, %cst_41 [1] : vector<8x8xf32> to vector<8xf32>
    %75 = vector.shape_cast %74 : vector<8xf32> to vector<8x1xf32>
    %76 = vector.broadcast %75 : vector<8x1xf32> to vector<8x8xf32>
    %77 = arith.subf %73, %76 : vector<8x8xf32>
    %78 = math.exp %77 : vector<8x8xf32>
    %cst_42 = arith.constant dense<0.000000e+00> : vector<8xf32>
    %79 = vector.multi_reduction <add>, %78, %cst_42 [1] : vector<8x8xf32> to vector<8xf32>
    %80 = vector.shape_cast %79 : vector<8xf32> to vector<8x1xf32>
    %81 = tpu.reciprocal %80 {approx = true} : vector<8x1xf32> -> vector<8x1xf32>
    %82 = vector.broadcast %81 : vector<8x1xf32> to vector<8x8xf32>
    %83 = arith.mulf %78, %82 : vector<8x8xf32>
    %cst_43 = arith.constant dense<0.000000e+00> : vector<8x128xf32>
    %84 = tpu.matmul %83, %72, %cst_43 {dimension_numbers = #tpu.dot_dimension_numbers<[1], [0], [0], [1], [0, 0, 1, 1], [], []>} : vector<8x8xf32>, vector<8x128xf32>, vector<8x128xf32> -> vector<8x128xf32>
    %85 = vector.extract_strided_slice %33 {offsets = [0, 384], sizes = [8, 128], strides = [1, 1]} : vector<8x1536xf32> to vector<8x128xf32>
    %cst_44 = arith.constant 0.288675129 : f32
    %86 = vector.broadcast %cst_44 : f32 to vector<8x128xf32>
    %87 = arith.mulf %85, %86 : vector<8x128xf32>
    %88 = vector.extract_strided_slice %33 {offsets = [0, 896], sizes = [8, 128], strides = [1, 1]} : vector<8x1536xf32> to vector<8x128xf32>
    %89 = vector.extract_strided_slice %33 {offsets = [0, 1408], sizes = [8, 128], strides = [1, 1]} : vector<8x1536xf32> to vector<8x128xf32>
    %cst_45 = arith.constant dense<0.000000e+00> : vector<8x8xf32>
    %90 = tpu.matmul %87, %88, %cst_45 {dimension_numbers = #tpu.dot_dimension_numbers<[1], [1], [0], [0], [0, 0, 1, 0], [], []>} : vector<8x128xf32>, vector<8x128xf32>, vector<8x8xf32> -> vector<8x8xf32>
    %cst_46 = arith.constant dense<0xFF800000> : vector<8xf32>
    %91 = vector.multi_reduction <maximumf>, %90, %cst_46 [1] : vector<8x8xf32> to vector<8xf32>
    %92 = vector.shape_cast %91 : vector<8xf32> to vector<8x1xf32>
    %93 = vector.broadcast %92 : vector<8x1xf32> to vector<8x8xf32>
    %94 = arith.subf %90, %93 : vector<8x8xf32>
    %95 = math.exp %94 : vector<8x8xf32>
    %cst_47 = arith.constant dense<0.000000e+00> : vector<8xf32>
    %96 = vector.multi_reduction <add>, %95, %cst_47 [1] : vector<8x8xf32> to vector<8xf32>
    %97 = vector.shape_cast %96 : vector<8xf32> to vector<8x1xf32>
    %98 = tpu.reciprocal %97 {approx = true} : vector<8x1xf32> -> vector<8x1xf32>
    %99 = vector.broadcast %98 : vector<8x1xf32> to vector<8x8xf32>
    %100 = arith.mulf %95, %99 : vector<8x8xf32>
    %cst_48 = arith.constant dense<0.000000e+00> : vector<8x128xf32>
    %101 = tpu.matmul %100, %89, %cst_48 {dimension_numbers = #tpu.dot_dimension_numbers<[1], [0], [0], [1], [0, 0, 1, 1], [], []>} : vector<8x8xf32>, vector<8x128xf32>, vector<8x128xf32> -> vector<8x128xf32>
    %102 = tpu.concatenate %50, %67, %84, %101 in 1 : vector<8x128xf32>, vector<8x128xf32>, vector<8x128xf32>, vector<8x128xf32> -> vector<8x512xf32>
    %c0_49 = arith.constant 0 : index
    %c0_50 = arith.constant 0 : index
    %c0_51 = arith.constant 0 : index
    %103 = vector.load %arg8[%c0_49, %c0_50, %c0_51] : memref<2x512x48xf32, #tpu.memory_space<vmem>>, vector<1x512x48xf32>
    %104 = vector.shape_cast %103 : vector<1x512x48xf32> to vector<512x48xf32>
    %cst_52 = arith.constant dense<0.000000e+00> : vector<8x48xf32>
    %105 = tpu.matmul %102, %104, %cst_52 {dimension_numbers = #tpu.dot_dimension_numbers<[1], [0], [0], [1], [0, 0, 1, 1], [], []>} : vector<8x512xf32>, vector<512x48xf32>, vector<8x48xf32> -> vector<8x48xf32>
    %c0_53 = arith.constant 0 : index
    %c0_54 = arith.constant 0 : index
    %c0_55 = arith.constant 0 : index
    %106 = vector.load %arg9[%c0_53, %c0_54, %c0_55] : memref<2x1x48xf32, #tpu.memory_space<vmem>>, vector<1x1x48xf32>
    %107 = vector.shape_cast %106 : vector<1x1x48xf32> to vector<1x48xf32>
    %108 = vector.broadcast %107 : vector<1x48xf32> to vector<8x48xf32>
    %109 = arith.addf %105, %108 : vector<8x48xf32>
    %110 = arith.addf %26, %109 : vector<8x48xf32>
    %c0_56 = arith.constant 0 : index
    %c0_57 = arith.constant 0 : index
    %c0_58 = arith.constant 0 : index
    %111 = vector.load %arg14[%c0_56, %c0_57, %c0_58] : memref<2x1x48xf32, #tpu.memory_space<vmem>>, vector<1x1x48xf32>
    %112 = vector.shape_cast %111 : vector<1x1x48xf32> to vector<1x48xf32>
    %c0_59 = arith.constant 0 : index
    %c0_60 = arith.constant 0 : index
    %c0_61 = arith.constant 0 : index
    %113 = vector.load %arg15[%c0_59, %c0_60, %c0_61] : memref<2x1x48xf32, #tpu.memory_space<vmem>>, vector<1x1x48xf32>
    %114 = vector.shape_cast %113 : vector<1x1x48xf32> to vector<1x48xf32>
    %cst_62 = arith.constant dense<0.000000e+00> : vector<8xf32>
    %115 = vector.multi_reduction <add>, %110, %cst_62 [1] : vector<8x48xf32> to vector<8xf32>
    %116 = vector.shape_cast %115 : vector<8xf32> to vector<8x1xf32>
    %cst_63 = arith.constant 4.800000e+01 : f32
    %117 = vector.broadcast %cst_63 : f32 to vector<8x1xf32>
    %118 = arith.divf %116, %117 : vector<8x1xf32>
    %119 = vector.broadcast %118 : vector<8x1xf32> to vector<8x48xf32>
    %120 = arith.subf %110, %119 : vector<8x48xf32>
    %121 = vector.broadcast %118 : vector<8x1xf32> to vector<8x48xf32>
    %122 = arith.subf %110, %121 : vector<8x48xf32>
    %123 = arith.mulf %120, %122 : vector<8x48xf32>
    %cst_64 = arith.constant dense<0.000000e+00> : vector<8xf32>
    %124 = vector.multi_reduction <add>, %123, %cst_64 [1] : vector<8x48xf32> to vector<8xf32>
    %125 = vector.shape_cast %124 : vector<8xf32> to vector<8x1xf32>
    %cst_65 = arith.constant 4.800000e+01 : f32
    %126 = vector.broadcast %cst_65 : f32 to vector<8x1xf32>
    %127 = arith.divf %125, %126 : vector<8x1xf32>
    %cst_66 = arith.constant 9.99999974E-6 : f32
    %128 = vector.broadcast %cst_66 : f32 to vector<8x1xf32>
    %129 = arith.addf %127, %128 : vector<8x1xf32>
    %130 = math.rsqrt %129 : vector<8x1xf32>
    %131 = vector.broadcast %118 : vector<8x1xf32> to vector<8x48xf32>
    %132 = arith.subf %110, %131 : vector<8x48xf32>
    %133 = vector.broadcast %130 : vector<8x1xf32> to vector<8x48xf32>
    %134 = arith.mulf %132, %133 : vector<8x48xf32>
    %135 = vector.broadcast %112 : vector<1x48xf32> to vector<8x48xf32>
    %136 = arith.mulf %134, %135 : vector<8x48xf32>
    %137 = vector.broadcast %114 : vector<1x48xf32> to vector<8x48xf32>
    %138 = arith.addf %136, %137 : vector<8x48xf32>
    %c0_67 = arith.constant 0 : index
    %c0_68 = arith.constant 0 : index
    %c0_69 = arith.constant 0 : index
    %139 = vector.load %arg10[%c0_67, %c0_68, %c0_69] : memref<2x48x48xf32, #tpu.memory_space<vmem>>, vector<1x48x48xf32>
    %140 = vector.shape_cast %139 : vector<1x48x48xf32> to vector<48x48xf32>
    %cst_70 = arith.constant dense<0.000000e+00> : vector<8x48xf32>
    %141 = tpu.matmul %138, %140, %cst_70 {dimension_numbers = #tpu.dot_dimension_numbers<[1], [0], [0], [1], [0, 0, 1, 1], [], []>} : vector<8x48xf32>, vector<48x48xf32>, vector<8x48xf32> -> vector<8x48xf32>
    %c0_71 = arith.constant 0 : index
    %c0_72 = arith.constant 0 : index
    %c0_73 = arith.constant 0 : index
    %142 = vector.load %arg11[%c0_71, %c0_72, %c0_73] : memref<2x1x48xf32, #tpu.memory_space<vmem>>, vector<1x1x48xf32>
    %143 = vector.shape_cast %142 : vector<1x1x48xf32> to vector<1x48xf32>
    %144 = vector.broadcast %143 : vector<1x48xf32> to vector<8x48xf32>
    %145 = arith.addf %141, %144 : vector<8x48xf32>
    %cst_74 = arith.constant 0.000000e+00 : f32
    %146 = vector.broadcast %cst_74 : f32 to vector<8x48xf32>
    %147 = arith.maximumf %145, %146 : vector<8x48xf32>
    %c0_75 = arith.constant 0 : index
    %c0_76 = arith.constant 0 : index
    %c0_77 = arith.constant 0 : index
    %148 = vector.load %arg12[%c0_75, %c0_76, %c0_77] : memref<2x48x48xf32, #tpu.memory_space<vmem>>, vector<1x48x48xf32>
    %149 = vector.shape_cast %148 : vector<1x48x48xf32> to vector<48x48xf32>
    %cst_78 = arith.constant dense<0.000000e+00> : vector<8x48xf32>
    %150 = tpu.matmul %147, %149, %cst_78 {dimension_numbers = #tpu.dot_dimension_numbers<[1], [0], [0], [1], [0, 0, 1, 1], [], []>} : vector<8x48xf32>, vector<48x48xf32>, vector<8x48xf32> -> vector<8x48xf32>
    %c0_79 = arith.constant 0 : index
    %c0_80 = arith.constant 0 : index
    %c0_81 = arith.constant 0 : index
    %151 = vector.load %arg13[%c0_79, %c0_80, %c0_81] : memref<2x1x48xf32, #tpu.memory_space<vmem>>, vector<1x1x48xf32>
    %152 = vector.shape_cast %151 : vector<1x1x48xf32> to vector<1x48xf32>
    %153 = vector.broadcast %152 : vector<1x48xf32> to vector<8x48xf32>
    %154 = arith.addf %150, %153 : vector<8x48xf32>
    %155 = arith.addf %138, %154 : vector<8x48xf32>
    %c0_82 = arith.constant 0 : index
    %c0_83 = arith.constant 0 : index
    %c0_84 = arith.constant 0 : index
    %156 = vector.load %arg16[%c0_82, %c0_83, %c0_84] : memref<2x1x48xf32, #tpu.memory_space<vmem>>, vector<1x1x48xf32>
    %157 = vector.shape_cast %156 : vector<1x1x48xf32> to vector<1x48xf32>
    %c0_85 = arith.constant 0 : index
    %c0_86 = arith.constant 0 : index
    %c0_87 = arith.constant 0 : index
    %158 = vector.load %arg17[%c0_85, %c0_86, %c0_87] : memref<2x1x48xf32, #tpu.memory_space<vmem>>, vector<1x1x48xf32>
    %159 = vector.shape_cast %158 : vector<1x1x48xf32> to vector<1x48xf32>
    %cst_88 = arith.constant dense<0.000000e+00> : vector<8xf32>
    %160 = vector.multi_reduction <add>, %155, %cst_88 [1] : vector<8x48xf32> to vector<8xf32>
    %161 = vector.shape_cast %160 : vector<8xf32> to vector<8x1xf32>
    %cst_89 = arith.constant 4.800000e+01 : f32
    %162 = vector.broadcast %cst_89 : f32 to vector<8x1xf32>
    %163 = arith.divf %161, %162 : vector<8x1xf32>
    %164 = vector.broadcast %163 : vector<8x1xf32> to vector<8x48xf32>
    %165 = arith.subf %155, %164 : vector<8x48xf32>
    %166 = vector.broadcast %163 : vector<8x1xf32> to vector<8x48xf32>
    %167 = arith.subf %155, %166 : vector<8x48xf32>
    %168 = arith.mulf %165, %167 : vector<8x48xf32>
    %cst_90 = arith.constant dense<0.000000e+00> : vector<8xf32>
    %169 = vector.multi_reduction <add>, %168, %cst_90 [1] : vector<8x48xf32> to vector<8xf32>
    %170 = vector.shape_cast %169 : vector<8xf32> to vector<8x1xf32>
    %cst_91 = arith.constant 4.800000e+01 : f32
    %171 = vector.broadcast %cst_91 : f32 to vector<8x1xf32>
    %172 = arith.divf %170, %171 : vector<8x1xf32>
    %cst_92 = arith.constant 9.99999974E-6 : f32
    %173 = vector.broadcast %cst_92 : f32 to vector<8x1xf32>
    %174 = arith.addf %172, %173 : vector<8x1xf32>
    %175 = math.rsqrt %174 : vector<8x1xf32>
    %176 = vector.broadcast %163 : vector<8x1xf32> to vector<8x48xf32>
    %177 = arith.subf %155, %176 : vector<8x48xf32>
    %178 = vector.broadcast %175 : vector<8x1xf32> to vector<8x48xf32>
    %179 = arith.mulf %177, %178 : vector<8x48xf32>
    %180 = vector.broadcast %157 : vector<1x48xf32> to vector<8x48xf32>
    %181 = arith.mulf %179, %180 : vector<8x48xf32>
    %182 = vector.broadcast %159 : vector<1x48xf32> to vector<8x48xf32>
    %183 = arith.addf %181, %182 : vector<8x48xf32>
    %c0_93 = arith.constant 0 : index
    %c0_94 = arith.constant 0 : index
    %c0_95 = arith.constant 0 : index
    %184 = vector.load %arg18[%c0_93, %c0_94, %c0_95] : memref<2x48x32xf32, #tpu.memory_space<vmem>>, vector<1x48x32xf32>
    %185 = vector.shape_cast %184 : vector<1x48x32xf32> to vector<48x32xf32>
    %cst_96 = arith.constant dense<0.000000e+00> : vector<8x32xf32>
    %186 = tpu.matmul %183, %185, %cst_96 {dimension_numbers = #tpu.dot_dimension_numbers<[1], [0], [0], [1], [0, 0, 1, 1], [], []>} : vector<8x48xf32>, vector<48x32xf32>, vector<8x32xf32> -> vector<8x32xf32>
    %c0_97 = arith.constant 0 : index
    %c0_98 = arith.constant 0 : index
    %c0_99 = arith.constant 0 : index
    %187 = vector.load %arg19[%c0_97, %c0_98, %c0_99] : memref<2x1x32xf32, #tpu.memory_space<vmem>>, vector<1x1x32xf32>
    %188 = vector.shape_cast %187 : vector<1x1x32xf32> to vector<1x32xf32>
    %189 = vector.broadcast %188 : vector<1x32xf32> to vector<8x32xf32>
    %190 = arith.addf %186, %189 : vector<8x32xf32>
    %c0_100 = arith.constant 0 : index
    %c0_101 = arith.constant 0 : index
    %191 = vector.load %arg25[%c0_100, %c0_101] : memref<8x48xf32, #tpu.memory_space<vmem>>, vector<8x32xf32>
    tpu.vector_store %arg25[%c0_100, %c0_101], %190 {strides = array<i32>} : memref<8x48xf32, #tpu.memory_space<vmem>>, vector<8x32xf32>,
    %c0_102 = arith.constant 0 : index
    %c0_103 = arith.constant 0 : index
    %192 = vector.load %arg25[%c0_102, %c0_103] : memref<8x48xf32, #tpu.memory_space<vmem>>, vector<8x48xf32>
    %c1 = arith.constant 1 : index
    %c0_104 = arith.constant 0 : index
    %c0_105 = arith.constant 0 : index
    %193 = vector.load %arg6[%c1, %c0_104, %c0_105] : memref<2x48x1536xf32, #tpu.memory_space<vmem>>, vector<1x48x1536xf32>
    %194 = vector.shape_cast %193 : vector<1x48x1536xf32> to vector<48x1536xf32>
    %cst_106 = arith.constant dense<0.000000e+00> : vector<8x1536xf32>
    %195 = tpu.matmul %192, %194, %cst_106 {dimension_numbers = #tpu.dot_dimension_numbers<[1], [0], [0], [1], [0, 0, 1, 1], [], []>} : vector<8x48xf32>, vector<48x1536xf32>, vector<8x1536xf32> -> vector<8x1536xf32>
    %c1_107 = arith.constant 1 : index
    %c0_108 = arith.constant 0 : index
    %c0_109 = arith.constant 0 : index
    %196 = vector.load %arg7[%c1_107, %c0_108, %c0_109] : memref<2x1x1536xf32, #tpu.memory_space<vmem>>, vector<1x1x1536xf32>
    %197 = vector.shape_cast %196 : vector<1x1x1536xf32> to vector<1x1536xf32>
    %198 = vector.broadcast %197 : vector<1x1536xf32> to vector<8x1536xf32>
    %199 = arith.addf %195, %198 : vector<8x1536xf32>
    %200 = vector.extract_strided_slice %199 {offsets = [0, 0], sizes = [8, 128], strides = [1, 1]} : vector<8x1536xf32> to vector<8x128xf32>
    %cst_110 = arith.constant 0.288675129 : f32
    %201 = vector.broadcast %cst_110 : f32 to vector<8x128xf32>
    %202 = arith.mulf %200, %201 : vector<8x128xf32>
    %203 = vector.extract_strided_slice %199 {offsets = [0, 512], sizes = [8, 128], strides = [1, 1]} : vector<8x1536xf32> to vector<8x128xf32>
    %204 = vector.extract_strided_slice %199 {offsets = [0, 1024], sizes = [8, 128], strides = [1, 1]} : vector<8x1536xf32> to vector<8x128xf32>
    %cst_111 = arith.constant dense<0.000000e+00> : vector<8x8xf32>
    %205 = tpu.matmul %202, %203, %cst_111 {dimension_numbers = #tpu.dot_dimension_numbers<[1], [1], [0], [0], [0, 0, 1, 0], [], []>} : vector<8x128xf32>, vector<8x128xf32>, vector<8x8xf32> -> vector<8x8xf32>
    %cst_112 = arith.constant dense<0xFF800000> : vector<8xf32>
    %206 = vector.multi_reduction <maximumf>, %205, %cst_112 [1] : vector<8x8xf32> to vector<8xf32>
    %207 = vector.shape_cast %206 : vector<8xf32> to vector<8x1xf32>
    %208 = vector.broadcast %207 : vector<8x1xf32> to vector<8x8xf32>
    %209 = arith.subf %205, %208 : vector<8x8xf32>
    %210 = math.exp %209 : vector<8x8xf32>
    %cst_113 = arith.constant dense<0.000000e+00> : vector<8xf32>
    %211 = vector.multi_reduction <add>, %210, %cst_113 [1] : vector<8x8xf32> to vector<8xf32>
    %212 = vector.shape_cast %211 : vector<8xf32> to vector<8x1xf32>
    %213 = tpu.reciprocal %212 {approx = true} : vector<8x1xf32> -> vector<8x1xf32>
    %214 = vector.broadcast %213 : vector<8x1xf32> to vector<8x8xf32>
    %215 = arith.mulf %210, %214 : vector<8x8xf32>
    %cst_114 = arith.constant dense<0.000000e+00> : vector<8x128xf32>
    %216 = tpu.matmul %215, %204, %cst_114 {dimension_numbers = #tpu.dot_dimension_numbers<[1], [0], [0], [1], [0, 0, 1, 1], [], []>} : vector<8x8xf32>, vector<8x128xf32>, vector<8x128xf32> -> vector<8x128xf32>
    %217 = vector.extract_strided_slice %199 {offsets = [0, 128], sizes = [8, 128], strides = [1, 1]} : vector<8x1536xf32> to vector<8x128xf32>
    %cst_115 = arith.constant 0.288675129 : f32
    %218 = vector.broadcast %cst_115 : f32 to vector<8x128xf32>
    %219 = arith.mulf %217, %218 : vector<8x128xf32>
    %220 = vector.extract_strided_slice %199 {offsets = [0, 640], sizes = [8, 128], strides = [1, 1]} : vector<8x1536xf32> to vector<8x128xf32>
    %221 = vector.extract_strided_slice %199 {offsets = [0, 1152], sizes = [8, 128], strides = [1, 1]} : vector<8x1536xf32> to vector<8x128xf32>
    %cst_116 = arith.constant dense<0.000000e+00> : vector<8x8xf32>
    %222 = tpu.matmul %219, %220, %cst_116 {dimension_numbers = #tpu.dot_dimension_numbers<[1], [1], [0], [0], [0, 0, 1, 0], [], []>} : vector<8x128xf32>, vector<8x128xf32>, vector<8x8xf32> -> vector<8x8xf32>
    %cst_117 = arith.constant dense<0xFF800000> : vector<8xf32>
    %223 = vector.multi_reduction <maximumf>, %222, %cst_117 [1] : vector<8x8xf32> to vector<8xf32>
    %224 = vector.shape_cast %223 : vector<8xf32> to vector<8x1xf32>
    %225 = vector.broadcast %224 : vector<8x1xf32> to vector<8x8xf32>
    %226 = arith.subf %222, %225 : vector<8x8xf32>
    %227 = math.exp %226 : vector<8x8xf32>
    %cst_118 = arith.constant dense<0.000000e+00> : vector<8xf32>
    %228 = vector.multi_reduction <add>, %227, %cst_118 [1] : vector<8x8xf32> to vector<8xf32>
    %229 = vector.shape_cast %228 : vector<8xf32> to vector<8x1xf32>
    %230 = tpu.reciprocal %229 {approx = true} : vector<8x1xf32> -> vector<8x1xf32>
    %231 = vector.broadcast %230 : vector<8x1xf32> to vector<8x8xf32>
    %232 = arith.mulf %227, %231 : vector<8x8xf32>
    %cst_119 = arith.constant dense<0.000000e+00> : vector<8x128xf32>
    %233 = tpu.matmul %232, %221, %cst_119 {dimension_numbers = #tpu.dot_dimension_numbers<[1], [0], [0], [1], [0, 0, 1, 1], [], []>} : vector<8x8xf32>, vector<8x128xf32>, vector<8x128xf32> -> vector<8x128xf32>
    %234 = vector.extract_strided_slice %199 {offsets = [0, 256], sizes = [8, 128], strides = [1, 1]} : vector<8x1536xf32> to vector<8x128xf32>
    %cst_120 = arith.constant 0.288675129 : f32
    %235 = vector.broadcast %cst_120 : f32 to vector<8x128xf32>
    %236 = arith.mulf %234, %235 : vector<8x128xf32>
    %237 = vector.extract_strided_slice %199 {offsets = [0, 768], sizes = [8, 128], strides = [1, 1]} : vector<8x1536xf32> to vector<8x128xf32>
    %238 = vector.extract_strided_slice %199 {offsets = [0, 1280], sizes = [8, 128], strides = [1, 1]} : vector<8x1536xf32> to vector<8x128xf32>
    %cst_121 = arith.constant dense<0.000000e+00> : vector<8x8xf32>
    %239 = tpu.matmul %236, %237, %cst_121 {dimension_numbers = #tpu.dot_dimension_numbers<[1], [1], [0], [0], [0, 0, 1, 0], [], []>} : vector<8x128xf32>, vector<8x128xf32>, vector<8x8xf32> -> vector<8x8xf32>
    %cst_122 = arith.constant dense<0xFF800000> : vector<8xf32>
    %240 = vector.multi_reduction <maximumf>, %239, %cst_122 [1] : vector<8x8xf32> to vector<8xf32>
    %241 = vector.shape_cast %240 : vector<8xf32> to vector<8x1xf32>
    %242 = vector.broadcast %241 : vector<8x1xf32> to vector<8x8xf32>
    %243 = arith.subf %239, %242 : vector<8x8xf32>
    %244 = math.exp %243 : vector<8x8xf32>
    %cst_123 = arith.constant dense<0.000000e+00> : vector<8xf32>
    %245 = vector.multi_reduction <add>, %244, %cst_123 [1] : vector<8x8xf32> to vector<8xf32>
    %246 = vector.shape_cast %245 : vector<8xf32> to vector<8x1xf32>
    %247 = tpu.reciprocal %246 {approx = true} : vector<8x1xf32> -> vector<8x1xf32>
    %248 = vector.broadcast %247 : vector<8x1xf32> to vector<8x8xf32>
    %249 = arith.mulf %244, %248 : vector<8x8xf32>
    %cst_124 = arith.constant dense<0.000000e+00> : vector<8x128xf32>
    %250 = tpu.matmul %249, %238, %cst_124 {dimension_numbers = #tpu.dot_dimension_numbers<[1], [0], [0], [1], [0, 0, 1, 1], [], []>} : vector<8x8xf32>, vector<8x128xf32>, vector<8x128xf32> -> vector<8x128xf32>
    %251 = vector.extract_strided_slice %199 {offsets = [0, 384], sizes = [8, 128], strides = [1, 1]} : vector<8x1536xf32> to vector<8x128xf32>
    %cst_125 = arith.constant 0.288675129 : f32
    %252 = vector.broadcast %cst_125 : f32 to vector<8x128xf32>
    %253 = arith.mulf %251, %252 : vector<8x128xf32>
    %254 = vector.extract_strided_slice %199 {offsets = [0, 896], sizes = [8, 128], strides = [1, 1]} : vector<8x1536xf32> to vector<8x128xf32>
    %255 = vector.extract_strided_slice %199 {offsets = [0, 1408], sizes = [8, 128], strides = [1, 1]} : vector<8x1536xf32> to vector<8x128xf32>
    %cst_126 = arith.constant dense<0.000000e+00> : vector<8x8xf32>
    %256 = tpu.matmul %253, %254, %cst_126 {dimension_numbers = #tpu.dot_dimension_numbers<[1], [1], [0], [0], [0, 0, 1, 0], [], []>} : vector<8x128xf32>, vector<8x128xf32>, vector<8x8xf32> -> vector<8x8xf32>
    %cst_127 = arith.constant dense<0xFF800000> : vector<8xf32>
    %257 = vector.multi_reduction <maximumf>, %256, %cst_127 [1] : vector<8x8xf32> to vector<8xf32>
    %258 = vector.shape_cast %257 : vector<8xf32> to vector<8x1xf32>
    %259 = vector.broadcast %258 : vector<8x1xf32> to vector<8x8xf32>
    %260 = arith.subf %256, %259 : vector<8x8xf32>
    %261 = math.exp %260 : vector<8x8xf32>
    %cst_128 = arith.constant dense<0.000000e+00> : vector<8xf32>
    %262 = vector.multi_reduction <add>, %261, %cst_128 [1] : vector<8x8xf32> to vector<8xf32>
    %263 = vector.shape_cast %262 : vector<8xf32> to vector<8x1xf32>
    %264 = tpu.reciprocal %263 {approx = true} : vector<8x1xf32> -> vector<8x1xf32>
    %265 = vector.broadcast %264 : vector<8x1xf32> to vector<8x8xf32>
    %266 = arith.mulf %261, %265 : vector<8x8xf32>
    %cst_129 = arith.constant dense<0.000000e+00> : vector<8x128xf32>
    %267 = tpu.matmul %266, %255, %cst_129 {dimension_numbers = #tpu.dot_dimension_numbers<[1], [0], [0], [1], [0, 0, 1, 1], [], []>} : vector<8x8xf32>, vector<8x128xf32>, vector<8x128xf32> -> vector<8x128xf32>
    %268 = tpu.concatenate %216, %233, %250, %267 in 1 : vector<8x128xf32>, vector<8x128xf32>, vector<8x128xf32>, vector<8x128xf32> -> vector<8x512xf32>
    %c1_130 = arith.constant 1 : index
    %c0_131 = arith.constant 0 : index
    %c0_132 = arith.constant 0 : index
    %269 = vector.load %arg8[%c1_130, %c0_131, %c0_132] : memref<2x512x48xf32, #tpu.memory_space<vmem>>, vector<1x512x48xf32>
    %270 = vector.shape_cast %269 : vector<1x512x48xf32> to vector<512x48xf32>
    %cst_133 = arith.constant dense<0.000000e+00> : vector<8x48xf32>
    %271 = tpu.matmul %268, %270, %cst_133 {dimension_numbers = #tpu.dot_dimension_numbers<[1], [0], [0], [1], [0, 0, 1, 1], [], []>} : vector<8x512xf32>, vector<512x48xf32>, vector<8x48xf32> -> vector<8x48xf32>
    %c1_134 = arith.constant 1 : index
    %c0_135 = arith.constant 0 : index
    %c0_136 = arith.constant 0 : index
    %272 = vector.load %arg9[%c1_134, %c0_135, %c0_136] : memref<2x1x48xf32, #tpu.memory_space<vmem>>, vector<1x1x48xf32>
    %273 = vector.shape_cast %272 : vector<1x1x48xf32> to vector<1x48xf32>
    %274 = vector.broadcast %273 : vector<1x48xf32> to vector<8x48xf32>
    %275 = arith.addf %271, %274 : vector<8x48xf32>
    %276 = arith.addf %192, %275 : vector<8x48xf32>
    %c1_137 = arith.constant 1 : index
    %c0_138 = arith.constant 0 : index
    %c0_139 = arith.constant 0 : index
    %277 = vector.load %arg14[%c1_137, %c0_138, %c0_139] : memref<2x1x48xf32, #tpu.memory_space<vmem>>, vector<1x1x48xf32>
    %278 = vector.shape_cast %277 : vector<1x1x48xf32> to vector<1x48xf32>
    %c1_140 = arith.constant 1 : index
    %c0_141 = arith.constant 0 : index
    %c0_142 = arith.constant 0 : index
    %279 = vector.load %arg15[%c1_140, %c0_141, %c0_142] : memref<2x1x48xf32, #tpu.memory_space<vmem>>, vector<1x1x48xf32>
    %280 = vector.shape_cast %279 : vector<1x1x48xf32> to vector<1x48xf32>
    %cst_143 = arith.constant dense<0.000000e+00> : vector<8xf32>
    %281 = vector.multi_reduction <add>, %276, %cst_143 [1] : vector<8x48xf32> to vector<8xf32>
    %282 = vector.shape_cast %281 : vector<8xf32> to vector<8x1xf32>
    %cst_144 = arith.constant 4.800000e+01 : f32
    %283 = vector.broadcast %cst_144 : f32 to vector<8x1xf32>
    %284 = arith.divf %282, %283 : vector<8x1xf32>
    %285 = vector.broadcast %284 : vector<8x1xf32> to vector<8x48xf32>
    %286 = arith.subf %276, %285 : vector<8x48xf32>
    %287 = vector.broadcast %284 : vector<8x1xf32> to vector<8x48xf32>
    %288 = arith.subf %276, %287 : vector<8x48xf32>
    %289 = arith.mulf %286, %288 : vector<8x48xf32>
    %cst_145 = arith.constant dense<0.000000e+00> : vector<8xf32>
    %290 = vector.multi_reduction <add>, %289, %cst_145 [1] : vector<8x48xf32> to vector<8xf32>
    %291 = vector.shape_cast %290 : vector<8xf32> to vector<8x1xf32>
    %cst_146 = arith.constant 4.800000e+01 : f32
    %292 = vector.broadcast %cst_146 : f32 to vector<8x1xf32>
    %293 = arith.divf %291, %292 : vector<8x1xf32>
    %cst_147 = arith.constant 9.99999974E-6 : f32
    %294 = vector.broadcast %cst_147 : f32 to vector<8x1xf32>
    %295 = arith.addf %293, %294 : vector<8x1xf32>
    %296 = math.rsqrt %295 : vector<8x1xf32>
    %297 = vector.broadcast %284 : vector<8x1xf32> to vector<8x48xf32>
    %298 = arith.subf %276, %297 : vector<8x48xf32>
    %299 = vector.broadcast %296 : vector<8x1xf32> to vector<8x48xf32>
    %300 = arith.mulf %298, %299 : vector<8x48xf32>
    %301 = vector.broadcast %278 : vector<1x48xf32> to vector<8x48xf32>
    %302 = arith.mulf %300, %301 : vector<8x48xf32>
    %303 = vector.broadcast %280 : vector<1x48xf32> to vector<8x48xf32>
    %304 = arith.addf %302, %303 : vector<8x48xf32>
    %c1_148 = arith.constant 1 : index
    %c0_149 = arith.constant 0 : index
    %c0_150 = arith.constant 0 : index
    %305 = vector.load %arg10[%c1_148, %c0_149, %c0_150] : memref<2x48x48xf32, #tpu.memory_space<vmem>>, vector<1x48x48xf32>
    %306 = vector.shape_cast %305 : vector<1x48x48xf32> to vector<48x48xf32>
    %cst_151 = arith.constant dense<0.000000e+00> : vector<8x48xf32>
    %307 = tpu.matmul %304, %306, %cst_151 {dimension_numbers = #tpu.dot_dimension_numbers<[1], [0], [0], [1], [0, 0, 1, 1], [], []>} : vector<8x48xf32>, vector<48x48xf32>, vector<8x48xf32> -> vector<8x48xf32>
    %c1_152 = arith.constant 1 : index
    %c0_153 = arith.constant 0 : index
    %c0_154 = arith.constant 0 : index
    %308 = vector.load %arg11[%c1_152, %c0_153, %c0_154] : memref<2x1x48xf32, #tpu.memory_space<vmem>>, vector<1x1x48xf32>
    %309 = vector.shape_cast %308 : vector<1x1x48xf32> to vector<1x48xf32>
    %310 = vector.broadcast %309 : vector<1x48xf32> to vector<8x48xf32>
    %311 = arith.addf %307, %310 : vector<8x48xf32>
    %cst_155 = arith.constant 0.000000e+00 : f32
    %312 = vector.broadcast %cst_155 : f32 to vector<8x48xf32>
    %313 = arith.maximumf %311, %312 : vector<8x48xf32>
    %c1_156 = arith.constant 1 : index
    %c0_157 = arith.constant 0 : index
    %c0_158 = arith.constant 0 : index
    %314 = vector.load %arg12[%c1_156, %c0_157, %c0_158] : memref<2x48x48xf32, #tpu.memory_space<vmem>>, vector<1x48x48xf32>
    %315 = vector.shape_cast %314 : vector<1x48x48xf32> to vector<48x48xf32>
    %cst_159 = arith.constant dense<0.000000e+00> : vector<8x48xf32>
    %316 = tpu.matmul %313, %315, %cst_159 {dimension_numbers = #tpu.dot_dimension_numbers<[1], [0], [0], [1], [0, 0, 1, 1], [], []>} : vector<8x48xf32>, vector<48x48xf32>, vector<8x48xf32> -> vector<8x48xf32>
    %c1_160 = arith.constant 1 : index
    %c0_161 = arith.constant 0 : index
    %c0_162 = arith.constant 0 : index
    %317 = vector.load %arg13[%c1_160, %c0_161, %c0_162] : memref<2x1x48xf32, #tpu.memory_space<vmem>>, vector<1x1x48xf32>
    %318 = vector.shape_cast %317 : vector<1x1x48xf32> to vector<1x48xf32>
    %319 = vector.broadcast %318 : vector<1x48xf32> to vector<8x48xf32>
    %320 = arith.addf %316, %319 : vector<8x48xf32>
    %321 = arith.addf %304, %320 : vector<8x48xf32>
    %c1_163 = arith.constant 1 : index
    %c0_164 = arith.constant 0 : index
    %c0_165 = arith.constant 0 : index
    %322 = vector.load %arg16[%c1_163, %c0_164, %c0_165] : memref<2x1x48xf32, #tpu.memory_space<vmem>>, vector<1x1x48xf32>
    %323 = vector.shape_cast %322 : vector<1x1x48xf32> to vector<1x48xf32>
    %c1_166 = arith.constant 1 : index
    %c0_167 = arith.constant 0 : index
    %c0_168 = arith.constant 0 : index
    %324 = vector.load %arg17[%c1_166, %c0_167, %c0_168] : memref<2x1x48xf32, #tpu.memory_space<vmem>>, vector<1x1x48xf32>
    %325 = vector.shape_cast %324 : vector<1x1x48xf32> to vector<1x48xf32>
    %cst_169 = arith.constant dense<0.000000e+00> : vector<8xf32>
    %326 = vector.multi_reduction <add>, %321, %cst_169 [1] : vector<8x48xf32> to vector<8xf32>
    %327 = vector.shape_cast %326 : vector<8xf32> to vector<8x1xf32>
    %cst_170 = arith.constant 4.800000e+01 : f32
    %328 = vector.broadcast %cst_170 : f32 to vector<8x1xf32>
    %329 = arith.divf %327, %328 : vector<8x1xf32>
    %330 = vector.broadcast %329 : vector<8x1xf32> to vector<8x48xf32>
    %331 = arith.subf %321, %330 : vector<8x48xf32>
    %332 = vector.broadcast %329 : vector<8x1xf32> to vector<8x48xf32>
    %333 = arith.subf %321, %332 : vector<8x48xf32>
    %334 = arith.mulf %331, %333 : vector<8x48xf32>
    %cst_171 = arith.constant dense<0.000000e+00> : vector<8xf32>
    %335 = vector.multi_reduction <add>, %334, %cst_171 [1] : vector<8x48xf32> to vector<8xf32>
    %336 = vector.shape_cast %335 : vector<8xf32> to vector<8x1xf32>
    %cst_172 = arith.constant 4.800000e+01 : f32
    %337 = vector.broadcast %cst_172 : f32 to vector<8x1xf32>
    %338 = arith.divf %336, %337 : vector<8x1xf32>
    %cst_173 = arith.constant 9.99999974E-6 : f32
    %339 = vector.broadcast %cst_173 : f32 to vector<8x1xf32>
    %340 = arith.addf %338, %339 : vector<8x1xf32>
    %341 = math.rsqrt %340 : vector<8x1xf32>
    %342 = vector.broadcast %329 : vector<8x1xf32> to vector<8x48xf32>
    %343 = arith.subf %321, %342 : vector<8x48xf32>
    %344 = vector.broadcast %341 : vector<8x1xf32> to vector<8x48xf32>
    %345 = arith.mulf %343, %344 : vector<8x48xf32>
    %346 = vector.broadcast %323 : vector<1x48xf32> to vector<8x48xf32>
    %347 = arith.mulf %345, %346 : vector<8x48xf32>
    %348 = vector.broadcast %325 : vector<1x48xf32> to vector<8x48xf32>
    %349 = arith.addf %347, %348 : vector<8x48xf32>
    %c1_174 = arith.constant 1 : index
    %c0_175 = arith.constant 0 : index
    %c0_176 = arith.constant 0 : index
    %350 = vector.load %arg18[%c1_174, %c0_175, %c0_176] : memref<2x48x32xf32, #tpu.memory_space<vmem>>, vector<1x48x32xf32>
    %351 = vector.shape_cast %350 : vector<1x48x32xf32> to vector<48x32xf32>
    %cst_177 = arith.constant dense<0.000000e+00> : vector<8x32xf32>
    %352 = tpu.matmul %349, %351, %cst_177 {dimension_numbers = #tpu.dot_dimension_numbers<[1], [0], [0], [1], [0, 0, 1, 1], [], []>} : vector<8x48xf32>, vector<48x32xf32>, vector<8x32xf32> -> vector<8x32xf32>
    %c1_178 = arith.constant 1 : index
    %c0_179 = arith.constant 0 : index
    %c0_180 = arith.constant 0 : index
    %353 = vector.load %arg19[%c1_178, %c0_179, %c0_180] : memref<2x1x32xf32, #tpu.memory_space<vmem>>, vector<1x1x32xf32>
    %354 = vector.shape_cast %353 : vector<1x1x32xf32> to vector<1x32xf32>
    %355 = vector.broadcast %354 : vector<1x32xf32> to vector<8x32xf32>
    %356 = arith.addf %352, %355 : vector<8x32xf32>
    %c0_181 = arith.constant 0 : index
    %c0_182 = arith.constant 0 : index
    %357 = vector.load %arg20[%c0_181, %c0_182] : memref<32x32xf32, #tpu.memory_space<vmem>>, vector<32x32xf32>
    %cst_183 = arith.constant dense<0.000000e+00> : vector<8x32xf32>
    %358 = tpu.matmul %356, %357, %cst_183 {dimension_numbers = #tpu.dot_dimension_numbers<[1], [0], [0], [1], [0, 0, 1, 1], [], []>} : vector<8x32xf32>, vector<32x32xf32>, vector<8x32xf32> -> vector<8x32xf32>
    %c0_184 = arith.constant 0 : index
    %c0_185 = arith.constant 0 : index
    %359 = vector.load %arg21[%c0_184, %c0_185] : memref<1x32xf32, #tpu.memory_space<vmem>>, vector<1x32xf32>
    %360 = vector.broadcast %359 : vector<1x32xf32> to vector<8x32xf32>
    %361 = arith.addf %358, %360 : vector<8x32xf32>
    %cst_186 = arith.constant 0.000000e+00 : f32
    %362 = vector.broadcast %cst_186 : f32 to vector<8x32xf32>
    %363 = arith.minimumf %361, %362 : vector<8x32xf32>
    %364 = math.exp %363 : vector<8x32xf32>
    %cst_187 = arith.constant 1.000000e+00 : f32
    %365 = vector.broadcast %cst_187 : f32 to vector<8x32xf32>
    %366 = arith.subf %364, %365 : vector<8x32xf32>
    %cst_188 = arith.constant 1.67326319 : f32
    %367 = vector.broadcast %cst_188 : f32 to vector<8x32xf32>
    %368 = arith.mulf %367, %366 : vector<8x32xf32>
    %cst_189 = arith.constant 0.000000e+00 : f32
    %369 = vector.broadcast %cst_189 : f32 to vector<8x32xf32>
    %370 = arith.cmpf ogt, %361, %369 : vector<8x32xf32>
    %371 = arith.select %370, %361, %368 : vector<8x32xi1>, vector<8x32xf32>
    %cst_190 = arith.constant 1.05070102 : f32
    %372 = vector.broadcast %cst_190 : f32 to vector<8x32xf32>
    %373 = arith.mulf %372, %371 : vector<8x32xf32>
    %c0_191 = arith.constant 0 : index
    %c0_192 = arith.constant 0 : index
    %374 = vector.load %arg22[%c0_191, %c0_192] : memref<32x16xf32, #tpu.memory_space<vmem>>, vector<32x16xf32>
    %cst_193 = arith.constant dense<0.000000e+00> : vector<8x16xf32>
    %375 = tpu.matmul %373, %374, %cst_193 {dimension_numbers = #tpu.dot_dimension_numbers<[1], [0], [0], [1], [0, 0, 1, 1], [], []>} : vector<8x32xf32>, vector<32x16xf32>, vector<8x16xf32> -> vector<8x16xf32>
    %c0_194 = arith.constant 0 : index
    %c0_195 = arith.constant 0 : index
    %376 = vector.load %arg23[%c0_194, %c0_195] : memref<1x16xf32, #tpu.memory_space<vmem>>, vector<1x16xf32>
    %377 = vector.broadcast %376 : vector<1x16xf32> to vector<8x16xf32>
    %378 = arith.addf %375, %377 : vector<8x16xf32>
    %c0_196 = arith.constant 0 : index
    %c0_197 = arith.constant 0 : index
    %379 = vector.load %arg24[%c0_196, %c0_197] : memref<8x16xf32, #tpu.memory_space<vmem>>, vector<8x16xf32>
    tpu.vector_store %arg24[%c0_196, %c0_197], %378 {strides = array<i32>} : memref<8x16xf32, #tpu.memory_space<vmem>>, vector<8x16xf32>,
    return
  }
}

</mosaic_0001>

<llo_original>
// kernel: transformer_autoencoder_forward.1
$region0: #{transformer_autoencoder_forward.1}
  #allocation0 [shape = 'u32[]', space=smem, size = 0x4, offset = 0x4, fixed_abs, tag = 'smem constant byte address 0x4 - core index']
  #allocation1 [shape = 'u32[72,128]{1,0:T(1,128)}', space=vmem, size = 0x9000, scoped, tag = 'internal scratch']
  #allocation2 [shape = 'f32[8,48]{1,0:T(8,128)}', space=vmem, size = 0x1000, scoped, tag = 'scratch operand']
  %s0 = inlined_call_operand.vmem [shape: f32[8,16], index: 0, kind: input, shape index: {}]
  %s1 = inlined_call_operand.vmem [shape: f32[8,16], index: 1, kind: input, shape index: {}]
  %s2 = inlined_call_operand.vmem [shape: f32[16,32], index: 2, kind: input, shape index: {}]
  %s3 = inlined_call_operand.vmem [shape: f32[1,32], index: 3, kind: input, shape index: {}]
  %s4 = inlined_call_operand.vmem [shape: f32[32,32], index: 4, kind: input, shape index: {}]
  %s5 = inlined_call_operand.vmem [shape: f32[1,32], index: 5, kind: input, shape index: {}]
  %s6 = inlined_call_operand.vmem [shape: f32[2,48,1536], index: 6, kind: input, shape index: {}]
  %s7 = inlined_call_operand.vmem [shape: f32[2,1,1536], index: 7, kind: input, shape index: {}]
  %s8 = inlined_call_operand.vmem [shape: f32[2,512,48], index: 8, kind: input, shape index: {}]
  %s9 = inlined_call_operand.vmem [shape: f32[2,1,48], index: 9, kind: input, shape index: {}]
  %s10 = inlined_call_operand.vmem [shape: f32[2,48,48], index: 10, kind: input, shape index: {}]
  %s11 = inlined_call_operand.vmem [shape: f32[2,1,48], index: 11, kind: input, shape index: {}]
  %s12 = inlined_call_operand.vmem [shape: f32[2,48,48], index: 12, kind: input, shape index: {}]
  %s13 = inlined_call_operand.vmem [shape: f32[2,1,48], index: 13, kind: input, shape index: {}]
  %s14 = inlined_call_operand.vmem [shape: f32[2,1,48], index: 14, kind: input, shape index: {}]
  %s15 = inlined_call_operand.vmem [shape: f32[2,1,48], index: 15, kind: input, shape index: {}]
  %s16 = inlined_call_operand.vmem [shape: f32[2,1,48], index: 16, kind: input, shape index: {}]
  %s17 = inlined_call_operand.vmem [shape: f32[2,1,48], index: 17, kind: input, shape index: {}]
  %s18 = inlined_call_operand.vmem [shape: f32[2,48,32], index: 18, kind: input, shape index: {}]
  %s19 = inlined_call_operand.vmem [shape: f32[2,1,32], index: 19, kind: input, shape index: {}]
  %s20 = inlined_call_operand.vmem [shape: f32[32,32], index: 20, kind: input, shape index: {}]
  %s21 = inlined_call_operand.vmem [shape: f32[1,32], index: 21, kind: input, shape index: {}]
  %s22 = inlined_call_operand.vmem [shape: f32[32,16], index: 22, kind: input, shape index: {}]
  %s23 = inlined_call_operand.vmem [shape: f32[1,16], index: 23, kind: input, shape index: {}]
  %s24 = inlined_call_operand.hbm [shape: f32[8,16], index: 24, kind: output, shape index: {}]
  %s25 = sld [smem:[#allocation0]]
  $region106: #{transformer_autoencoder_forward.1} parent=0
    _
  %s27 = ssub.s32 1, %s25
  %s28 = scalar_select 0, %s27, %s25
  $region1: #{transformer_autoencoder_forward.1} parent=0
    #allocation3 [shape = 'u8[4096]{0}', space=vmem, size = 0x1000, scoped, tag = 'output window, operand 0, single buffered']
    #allocation4 [shape = 's32[1]{0}', space=sflag, size = 0x4, scoped, tag = 'scoped memory for transformer_autoencoder_forward.1']
    %29 = vsyncpa [#allocation4], 0
    // Predicated region
    $region2: #{transformer_autoencoder_forward.1} parent=1 // pred_check
      _
    $region3: #{transformer_autoencoder_forward.1} parent=1 // pred_check_branch
      %31 = sbr.rel (0) target = $region5
    $region4: #{transformer_autoencoder_forward.1} parent=1 // pred_region
      _
    $region5: #{transformer_autoencoder_forward.1} parent=1 // pred_fallthru
      _
    // Predicated region
    $region6: #{transformer_autoencoder_forward.1} parent=1 // pred_check
      _
    $region7: #{transformer_autoencoder_forward.1} parent=1 // pred_check_branch
      %33 = sbr.rel (0) target = $region9
    $region8: #{transformer_autoencoder_forward.1} parent=1 // pred_region
      _
    $region9: #{transformer_autoencoder_forward.1} parent=1 // pred_fallthru
      _
    // Predicated region
    $region10: #{transformer_autoencoder_forward.1} parent=1 // pred_check
      _
    $region11: #{transformer_autoencoder_forward.1} parent=1 // pred_check_branch
      %35 = sbr.rel (0) target = $region13
    $region12: #{transformer_autoencoder_forward.1} parent=1 // pred_region
      _
    $region13: #{transformer_autoencoder_forward.1} parent=1 // pred_fallthru
      _
    // Predicated region
    $region14: #{transformer_autoencoder_forward.1} parent=1 // pred_check
      _
    $region15: #{transformer_autoencoder_forward.1} parent=1 // pred_check_branch
      %37 = sbr.rel (0) target = $region17
    $region16: #{transformer_autoencoder_forward.1} parent=1 // pred_region
      _
    $region17: #{transformer_autoencoder_forward.1} parent=1 // pred_fallthru
      _
    // Predicated region
    $region18: #{transformer_autoencoder_forward.1} parent=1 // pred_check
      _
    $region19: #{transformer_autoencoder_forward.1} parent=1 // pred_check_branch
      %39 = sbr.rel (0) target = $region21
    $region20: #{transformer_autoencoder_forward.1} parent=1 // pred_region
      _
    $region21: #{transformer_autoencoder_forward.1} parent=1 // pred_fallthru
      _
    // Predicated region
    $region22: #{transformer_autoencoder_forward.1} parent=1 // pred_check
      _
    $region23: #{transformer_autoencoder_forward.1} parent=1 // pred_check_branch
      %41 = sbr.rel (0) target = $region25
    $region24: #{transformer_autoencoder_forward.1} parent=1 // pred_region
      _
    $region25: #{transformer_autoencoder_forward.1} parent=1 // pred_fallthru
      _
    // Predicated region
    $region26: #{transformer_autoencoder_forward.1} parent=1 // pred_check
      _
    $region27: #{transformer_autoencoder_forward.1} parent=1 // pred_check_branch
      %43 = sbr.rel (0) target = $region29
    $region28: #{transformer_autoencoder_forward.1} parent=1 // pred_region
      _
    $region29: #{transformer_autoencoder_forward.1} parent=1 // pred_fallthru
      _
    // Predicated region
    $region30: #{transformer_autoencoder_forward.1} parent=1 // pred_check
      _
    $region31: #{transformer_autoencoder_forward.1} parent=1 // pred_check_branch
      %45 = sbr.rel (0) target = $region33
    $region32: #{transformer_autoencoder_forward.1} parent=1 // pred_region
      _
    $region33: #{transformer_autoencoder_forward.1} parent=1 // pred_fallthru
      _
    // Predicated region
    $region34: #{transformer_autoencoder_forward.1} parent=1 // pred_check
      _
    $region35: #{transformer_autoencoder_forward.1} parent=1 // pred_check_branch
      %47 = sbr.rel (0) target = $region37
    $region36: #{transformer_autoencoder_forward.1} parent=1 // pred_region
      _
    $region37: #{transformer_autoencoder_forward.1} parent=1 // pred_fallthru
      _
    // Predicated region
    $region38: #{transformer_autoencoder_forward.1} parent=1 // pred_check
      _
    $region39: #{transformer_autoencoder_forward.1} parent=1 // pred_check_branch
      %49 = sbr.rel (0) target = $region41
    $region40: #{transformer_autoencoder_forward.1} parent=1 // pred_region
      _
    $region41: #{transformer_autoencoder_forward.1} parent=1 // pred_fallthru
      _
    // Predicated region
    $region42: #{transformer_autoencoder_forward.1} parent=1 // pred_check
      _
    $region43: #{transformer_autoencoder_forward.1} parent=1 // pred_check_branch
      %51 = sbr.rel (0) target = $region45
    $region44: #{transformer_autoencoder_forward.1} parent=1 // pred_region
      _
    $region45: #{transformer_autoencoder_forward.1} parent=1 // pred_fallthru
      _
    // Predicated region
    $region46: #{transformer_autoencoder_forward.1} parent=1 // pred_check
      _
    $region47: #{transformer_autoencoder_forward.1} parent=1 // pred_check_branch
      %53 = sbr.rel (0) target = $region49
    $region48: #{transformer_autoencoder_forward.1} parent=1 // pred_region
      _
    $region49: #{transformer_autoencoder_forward.1} parent=1 // pred_fallthru
      _
    // Predicated region
    $region50: #{transformer_autoencoder_forward.1} parent=1 // pred_check
      _
    $region51: #{transformer_autoencoder_forward.1} parent=1 // pred_check_branch
      %55 = sbr.rel (0) target = $region53
    $region52: #{transformer_autoencoder_forward.1} parent=1 // pred_region
      _
    $region53: #{transformer_autoencoder_forward.1} parent=1 // pred_fallthru
      _
    // Predicated region
    $region54: #{transformer_autoencoder_forward.1} parent=1 // pred_check
      _
    $region55: #{transformer_autoencoder_forward.1} parent=1 // pred_check_branch
      %57 = sbr.rel (0) target = $region57
    $region56: #{transformer_autoencoder_forward.1} parent=1 // pred_region
      _
    $region57: #{transformer_autoencoder_forward.1} parent=1 // pred_fallthru
      _
    // Predicated region
    $region58: #{transformer_autoencoder_forward.1} parent=1 // pred_check
      _
    $region59: #{transformer_autoencoder_forward.1} parent=1 // pred_check_branch
      %59 = sbr.rel (0) target = $region61
    $region60: #{transformer_autoencoder_forward.1} parent=1 // pred_region
      _
    $region61: #{transformer_autoencoder_forward.1} parent=1 // pred_fallthru
      _
    // Predicated region
    $region62: #{transformer_autoencoder_forward.1} parent=1 // pred_check
      _
    $region63: #{transformer_autoencoder_forward.1} parent=1 // pred_check_branch
      %61 = sbr.rel (0) target = $region65
    $region64: #{transformer_autoencoder_forward.1} parent=1 // pred_region
      _
    $region65: #{transformer_autoencoder_forward.1} parent=1 // pred_fallthru
      _
    // Predicated region
    $region66: #{transformer_autoencoder_forward.1} parent=1 // pred_check
      _
    $region67: #{transformer_autoencoder_forward.1} parent=1 // pred_check_branch
      %63 = sbr.rel (0) target = $region69
    $region68: #{transformer_autoencoder_forward.1} parent=1 // pred_region
      _
    $region69: #{transformer_autoencoder_forward.1} parent=1 // pred_fallthru
      _
    // Predicated region
    $region70: #{transformer_autoencoder_forward.1} parent=1 // pred_check
      _
    $region71: #{transformer_autoencoder_forward.1} parent=1 // pred_check_branch
      %65 = sbr.rel (0) target = $region73
    $region72: #{transformer_autoencoder_forward.1} parent=1 // pred_region
      _
    $region73: #{transformer_autoencoder_forward.1} parent=1 // pred_fallthru
      _
    // Predicated region
    $region74: #{transformer_autoencoder_forward.1} parent=1 // pred_check
      _
    $region75: #{transformer_autoencoder_forward.1} parent=1 // pred_check_branch
      %67 = sbr.rel (0) target = $region77
    $region76: #{transformer_autoencoder_forward.1} parent=1 // pred_region
      _
    $region77: #{transformer_autoencoder_forward.1} parent=1 // pred_fallthru
      _
    // Predicated region
    $region78: #{transformer_autoencoder_forward.1} parent=1 // pred_check
      _
    $region79: #{transformer_autoencoder_forward.1} parent=1 // pred_check_branch
      %69 = sbr.rel (0) target = $region81
    $region80: #{transformer_autoencoder_forward.1} parent=1 // pred_region
      _
    $region81: #{transformer_autoencoder_forward.1} parent=1 // pred_fallthru
      _
    // Predicated region
    $region82: #{transformer_autoencoder_forward.1} parent=1 // pred_check
      _
    $region83: #{transformer_autoencoder_forward.1} parent=1 // pred_check_branch
      %71 = sbr.rel (0) target = $region85
    $region84: #{transformer_autoencoder_forward.1} parent=1 // pred_region
      _
    $region85: #{transformer_autoencoder_forward.1} parent=1 // pred_fallthru
      _
    // Predicated region
    $region86: #{transformer_autoencoder_forward.1} parent=1 // pred_check
      _
    $region87: #{transformer_autoencoder_forward.1} parent=1 // pred_check_branch
      %73 = sbr.rel (0) target = $region89
    $region88: #{transformer_autoencoder_forward.1} parent=1 // pred_region
      _
    $region89: #{transformer_autoencoder_forward.1} parent=1 // pred_fallthru
      _
    // Predicated region
    $region90: #{transformer_autoencoder_forward.1} parent=1 // pred_check
      _
    $region91: #{transformer_autoencoder_forward.1} parent=1 // pred_check_branch
      %75 = sbr.rel (0) target = $region93
    $region92: #{transformer_autoencoder_forward.1} parent=1 // pred_region
      _
    $region93: #{transformer_autoencoder_forward.1} parent=1 // pred_fallthru
      _
    // Predicated region
    $region94: #{transformer_autoencoder_forward.1} parent=1 // pred_check
      _
    $region95: #{transformer_autoencoder_forward.1} parent=1 // pred_check_branch
      %77 = sbr.rel (0) target = $region97
    $region96: #{transformer_autoencoder_forward.1} parent=1 // pred_region
      _
    $region97: #{transformer_autoencoder_forward.1} parent=1 // pred_fallthru
      _
    %v78 = vld [vmem:[%s0] sm:$0xff]
    %v79 = vld [vmem:[%s2] sm:$0xff]
    %v80 = vld [vmem:[%s2 + $0x8] sm:$0xff]
    %v81 = vld [vmem:[%s3] sm:$0x1]
    %v83 = vperm.slane %v81, 0
    %vm85 = vcmask 130048
    %v87 = vsel %vm85, %v78, 0
    %89 = vmatpush.msra.mxu0 0.0
    %90 = vmatpush.msra.mxu0 0.0
    %91 = vmatpush.msra.mxu0 0.0
    %92 = vmatpush.msra.mxu0 0.0
    %93 = vmatpush.msra.mxu0 0.0
    %94 = vmatpush.msra.mxu0 0.0
    %95 = vmatpush.msra.mxu0 0.0
    %96 = vmatpush.msra.mxu0 0.0
    %97 = vmatpush.msra.mxu0 0.0
    %98 = vmatpush.msra.mxu0 0.0
    %99 = vmatpush.msra.mxu0 0.0
    %100 = vmatpush.msra.mxu0 0.0
    %101 = vmatpush.msra.mxu0 0.0
    %102 = vmatpush.msra.mxu0 0.0
    %103 = vmatpush.msra.mxu0 %v80
    %104 = vmatpush.msra.mxu0 %v79
    %105 = vmatmul.f32.gmra.mxu0 %v87
    %v106 = vpop.f32.mrf.mxu0
    %v107 = vadd.f32 %v83, %v106
    %108 = vdwg.mxu0
    %v109 = vmin.f32 %v107, 0.0
    %v110 = vmul.f32 %v109, 1.442695
    %v111 = vpow.pop %v110
    %v112 = vsub.f32 %v111, 1.0
    %v113 = vmul.f32 %v112, 1.6732632
    %vm114 = vcmp.gt.f32.partialorder %v107, 0.0
    %v115 = vsel %vm114, %v107, %v113
    %v116 = vmul.f32 %v115, 1.050701
    %v117 = vld [vmem:[%s4] sm:$0xff]
    %v118 = vld [vmem:[%s4 + $0x8] sm:$0xff]
    %v119 = vld [vmem:[%s4 + $0x10] sm:$0xff]
    %v120 = vld [vmem:[%s4 + $0x18] sm:$0xff]
    %v121 = vld [vmem:[%s5] sm:$0x1]
    %v123 = vperm.slane %v121, 0
    %vm125 = vcmask 261120
    %v127 = vsel %vm125, %v116, 0
    %129 = vmatpush.msra.mxu0 0.0
    %130 = vmatpush.msra.mxu0 0.0
    %131 = vmatpush.msra.mxu0 0.0
    %132 = vmatpush.msra.mxu0 0.0
    %133 = vmatpush.msra.mxu0 0.0
    %134 = vmatpush.msra.mxu0 0.0
    %135 = vmatpush.msra.mxu0 0.0
    %136 = vmatpush.msra.mxu0 0.0
    %137 = vmatpush.msra.mxu0 0.0
    %138 = vmatpush.msra.mxu0 0.0
    %139 = vmatpush.msra.mxu0 0.0
    %140 = vmatpush.msra.mxu0 0.0
    %141 = vmatpush.msra.mxu0 %v120
    %142 = vmatpush.msra.mxu0 %v119
    %143 = vmatpush.msra.mxu0 %v118
    %144 = vmatpush.msra.mxu0 %v117
    %145 = vmatmul.f32.gmra.mxu0 %v127
    %v146 = vpop.f32.mrf.mxu0
    %v147 = vadd.f32 %v123, %v146
    %148 = vdwg.mxu0
    %v149 = vld [vmem:[%s1] sm:$0xff]
    %151 = vrot.lane.b32.xlu0 %v149, 32
    %v152 = vpop.permute.xlu0 %151
    %vm154 = vcmask 392448
    %155 = vst.msk [vmem:[#allocation2] sm:$0xff] %vm154, %v152
    %156 = vst.msk [vmem:[#allocation2] sm:$0xff] %vm125, %v147
    %v157 = vld [vmem:[#allocation2] sm:$0xff]
    %v158 = vld [vmem:[%s6] sm:$0xff]
    %v159 = vld [vmem:[%s6 + $0x8] sm:$0xff]
    %v160 = vld [vmem:[%s6 + $0x10] sm:$0xff]
    %v161 = vld [vmem:[%s6 + $0x18] sm:$0xff]
    %v162 = vld [vmem:[%s6 + $0x20] sm:$0xff]
    %v163 = vld [vmem:[%s6 + $0x28] sm:$0xff]
    %v164 = vld [vmem:[%s6 + $0x30] sm:$0xff]
    %v165 = vld [vmem:[%s6 + $0x38] sm:$0xff]
    %v166 = vld [vmem:[%s6 + $0x40] sm:$0xff]
    %v167 = vld [vmem:[%s6 + $0x48] sm:$0xff]
    %v168 = vld [vmem:[%s6 + $0x50] sm:$0xff]
    %v169 = vld [vmem:[%s6 + $0x58] sm:$0xff]
    %v170 = vld [vmem:[%s6 + $0x60] sm:$0xff]
    %v171 = vld [vmem:[%s6 + $0x68] sm:$0xff]
    %v172 = vld [vmem:[%s6 + $0x70] sm:$0xff]
    %v173 = vld [vmem:[%s6 + $0x78] sm:$0xff]
    %v174 = vld [vmem:[%s6 + $0x80] sm:$0xff]
    %v175 = vld [vmem:[%s6 + $0x88] sm:$0xff]
    %v176 = vld [vmem:[%s6 + $0x90] sm:$0xff]
    %v177 = vld [vmem:[%s6 + $0x98] sm:$0xff]
    %v178 = vld [vmem:[%s6 + $0xa0] sm:$0xff]
    %v179 = vld [vmem:[%s6 + $0xa8] sm:$0xff]
    %v180 = vld [vmem:[%s6 + $0xb0] sm:$0xff]
    %v181 = vld [vmem:[%s6 + $0xb8] sm:$0xff]
    %v182 = vld [vmem:[%s6 + $0xc0] sm:$0xff]
    %v183 = vld [vmem:[%s6 + $0xc8] sm:$0xff]
    %v184 = vld [vmem:[%s6 + $0xd0] sm:$0xff]
    %v185 = vld [vmem:[%s6 + $0xd8] sm:$0xff]
    %v186 = vld [vmem:[%s6 + $0xe0] sm:$0xff]
    %v187 = vld [vmem:[%s6 + $0xe8] sm:$0xff]
    %v188 = vld [vmem:[%s6 + $0xf0] sm:$0xff]
    %v189 = vld [vmem:[%s6 + $0xf8] sm:$0xff]
    %v190 = vld [vmem:[%s6 + $0x100] sm:$0xff]
    %v191 = vld [vmem:[%s6 + $0x108] sm:$0xff]
    %v192 = vld [vmem:[%s6 + $0x110] sm:$0xff]
    %v193 = vld [vmem:[%s6 + $0x118] sm:$0xff]
    %v194 = vld [vmem:[%s6 + $0x120] sm:$0xff]
    %v195 = vld [vmem:[%s6 + $0x128] sm:$0xff]
    %v196 = vld [vmem:[%s6 + $0x130] sm:$0xff]
    %v197 = vld [vmem:[%s6 + $0x138] sm:$0xff]
    %v198 = vld [vmem:[%s6 + $0x140] sm:$0xff]
    %v199 = vld [vmem:[%s6 + $0x148] sm:$0xff]
    %v200 = vld [vmem:[%s6 + $0x150] sm:$0xff]
    %v201 = vld [vmem:[%s6 + $0x158] sm:$0xff]
    %v202 = vld [vmem:[%s6 + $0x160] sm:$0xff]
    %v203 = vld [vmem:[%s6 + $0x168] sm:$0xff]
    %v204 = vld [vmem:[%s6 + $0x170] sm:$0xff]
    %v205 = vld [vmem:[%s6 + $0x178] sm:$0xff]
    %v206 = vld [vmem:[%s6 + $0x180] sm:$0xff]
    %v207 = vld [vmem:[%s6 + $0x188] sm:$0xff]
    %v208 = vld [vmem:[%s6 + $0x190] sm:$0xff]
    %v209 = vld [vmem:[%s6 + $0x198] sm:$0xff]
    %v210 = vld [vmem:[%s6 + $0x1a0] sm:$0xff]
    %v211 = vld [vmem:[%s6 + $0x1a8] sm:$0xff]
    %v212 = vld [vmem:[%s6 + $0x1b0] sm:$0xff]
    %v213 = vld [vmem:[%s6 + $0x1b8] sm:$0xff]
    %v214 = vld [vmem:[%s6 + $0x1c0] sm:$0xff]
    %v215 = vld [vmem:[%s6 + $0x1c8] sm:$0xff]
    %v216 = vld [vmem:[%s6 + $0x1d0] sm:$0xff]
    %v217 = vld [vmem:[%s6 + $0x1d8] sm:$0xff]
    %v218 = vld [vmem:[%s6 + $0x1e0] sm:$0xff]
    %v219 = vld [vmem:[%s6 + $0x1e8] sm:$0xff]
    %v220 = vld [vmem:[%s6 + $0x1f0] sm:$0xff]
    %v221 = vld [vmem:[%s6 + $0x1f8] sm:$0xff]
    %v222 = vld [vmem:[%s6 + $0x200] sm:$0xff]
    %v223 = vld [vmem:[%s6 + $0x208] sm:$0xff]
    %v224 = vld [vmem:[%s6 + $0x210] sm:$0xff]
    %v225 = vld [vmem:[%s6 + $0x218] sm:$0xff]
    %v226 = vld [vmem:[%s6 + $0x220] sm:$0xff]
    %v227 = vld [vmem:[%s6 + $0x228] sm:$0xff]
    %v228 = vld [vmem:[%s6 + $0x230] sm:$0xff]
    %v229 = vld [vmem:[%s6 + $0x238] sm:$0xff]
    %v230 = vld [vmem:[%s7] sm:$0xff]
    %v231 = vld [vmem:[%s7 + $0x8] sm:$0xf]
    %v234 = vperm.slane %v230, 0
    %v235 = vperm.slane %v230, 1
    %v236 = vperm.slane %v230, 2
    %v237 = vperm.slane %v230, 3
    %v238 = vperm.slane %v230, 4
    %v239 = vperm.slane %v230, 5
    %v240 = vperm.slane %v230, 6
    %v241 = vperm.slane %v230, 7
    %v242 = vperm.slane %v231, 0
    %v243 = vperm.slane %v231, 1
    %v244 = vperm.slane %v231, 2
    %v245 = vperm.slane %v231, 3
    %vm258 = vcmask 392192
    %v260 = vsel %vm258, %v157, 0
    %262 = vmatpush.msra.mxu0 0.0
    %263 = vmatpush.msra.mxu0 0.0
    %264 = vmatpush.msra.mxu0 0.0
    %265 = vmatpush.msra.mxu0 0.0
    %266 = vmatpush.msra.mxu0 0.0
    %267 = vmatpush.msra.mxu0 0.0
    %268 = vmatpush.msra.mxu0 0.0
    %269 = vmatpush.msra.mxu0 0.0
    %270 = vmatpush.msra.mxu0 0.0
    %271 = vmatpush.msra.mxu0 0.0
    %272 = vmatpush.msra.mxu0 %v218
    %273 = vmatpush.msra.mxu0 %v206
    %274 = vmatpush.msra.mxu0 %v194
    %275 = vmatpush.msra.mxu0 %v182
    %276 = vmatpush.msra.mxu0 %v170
    %277 = vmatpush.msra.mxu0 %v158
    %278 = vmatmul.f32.gmra.mxu0 %v260
    %v279 = vpop.f32.mrf.mxu0
    %v280 = vadd.f32 %v234, %v279
    %281 = vdwg.mxu0
    %282 = vmatpush.msra.mxu0 0.0
    %283 = vmatpush.msra.mxu0 0.0
    %284 = vmatpush.msra.mxu0 0.0
    %285 = vmatpush.msra.mxu0 0.0
    %286 = vmatpush.msra.mxu0 0.0
    %287 = vmatpush.msra.mxu0 0.0
    %288 = vmatpush.msra.mxu0 0.0
    %289 = vmatpush.msra.mxu0 0.0
    %290 = vmatpush.msra.mxu0 0.0
    %291 = vmatpush.msra.mxu0 0.0
    %292 = vmatpush.msra.mxu0 %v219
    %293 = vmatpush.msra.mxu0 %v207
    %294 = vmatpush.msra.mxu0 %v195
    %295 = vmatpush.msra.mxu0 %v183
    %296 = vmatpush.msra.mxu0 %v171
    %297 = vmatpush.msra.mxu0 %v159
    %298 = vmatmul.f32.gmra.mxu0 %v260
    %v299 = vpop.f32.mrf.mxu0
    %v300 = vadd.f32 %v235, %v299
    %301 = vdwg.mxu0
    %302 = vmatpush.msra.mxu0 0.0
    %303 = vmatpush.msra.mxu0 0.0
    %304 = vmatpush.msra.mxu0 0.0
    %305 = vmatpush.msra.mxu0 0.0
    %306 = vmatpush.msra.mxu0 0.0
    %307 = vmatpush.msra.mxu0 0.0
    %308 = vmatpush.msra.mxu0 0.0
    %309 = vmatpush.msra.mxu0 0.0
    %310 = vmatpush.msra.mxu0 0.0
    %311 = vmatpush.msra.mxu0 0.0
    %312 = vmatpush.msra.mxu0 %v220
    %313 = vmatpush.msra.mxu0 %v208
    %314 = vmatpush.msra.mxu0 %v196
    %315 = vmatpush.msra.mxu0 %v184
    %316 = vmatpush.msra.mxu0 %v172
    %317 = vmatpush.msra.mxu0 %v160
    %318 = vmatmul.f32.gmra.mxu0 %v260
    %v319 = vpop.f32.mrf.mxu0
    %v320 = vadd.f32 %v236, %v319
    %321 = vdwg.mxu0
    %322 = vmatpush.msra.mxu0 0.0
    %323 = vmatpush.msra.mxu0 0.0
    %324 = vmatpush.msra.mxu0 0.0
    %325 = vmatpush.msra.mxu0 0.0
    %326 = vmatpush.msra.mxu0 0.0
    %327 = vmatpush.msra.mxu0 0.0
    %328 = vmatpush.msra.mxu0 0.0
    %329 = vmatpush.msra.mxu0 0.0
    %330 = vmatpush.msra.mxu0 0.0
    %331 = vmatpush.msra.mxu0 0.0
    %332 = vmatpush.msra.mxu0 %v221
    %333 = vmatpush.msra.mxu0 %v209
    %334 = vmatpush.msra.mxu0 %v197
    %335 = vmatpush.msra.mxu0 %v185
    %336 = vmatpush.msra.mxu0 %v173
    %337 = vmatpush.msra.mxu0 %v161
    %338 = vmatmul.f32.gmra.mxu0 %v260
    %v339 = vpop.f32.mrf.mxu0
    %v340 = vadd.f32 %v237, %v339
    %341 = vdwg.mxu0
    %342 = vmatpush.msra.mxu0 0.0
    %343 = vmatpush.msra.mxu0 0.0
    %344 = vmatpush.msra.mxu0 0.0
    %345 = vmatpush.msra.mxu0 0.0
    %346 = vmatpush.msra.mxu0 0.0
    %347 = vmatpush.msra.mxu0 0.0
    %348 = vmatpush.msra.mxu0 0.0
    %349 = vmatpush.msra.mxu0 0.0
    %350 = vmatpush.msra.mxu0 0.0
    %351 = vmatpush.msra.mxu0 0.0
    %352 = vmatpush.msra.mxu0 %v222
    %353 = vmatpush.msra.mxu0 %v210
    %354 = vmatpush.msra.mxu0 %v198
    %355 = vmatpush.msra.mxu0 %v186
    %356 = vmatpush.msra.mxu0 %v174
    %357 = vmatpush.msra.mxu0 %v162
    %358 = vmatmul.f32.gmra.mxu0 %v260
    %v359 = vpop.f32.mrf.mxu0
    %v360 = vadd.f32 %v238, %v359
    %361 = vdwg.mxu0
    %362 = vmatpush.msra.mxu0 0.0
    %363 = vmatpush.msra.mxu0 0.0
    %364 = vmatpush.msra.mxu0 0.0
    %365 = vmatpush.msra.mxu0 0.0
    %366 = vmatpush.msra.mxu0 0.0
    %367 = vmatpush.msra.mxu0 0.0
    %368 = vmatpush.msra.mxu0 0.0
    %369 = vmatpush.msra.mxu0 0.0
    %370 = vmatpush.msra.mxu0 0.0
    %371 = vmatpush.msra.mxu0 0.0
    %372 = vmatpush.msra.mxu0 %v223
    %373 = vmatpush.msra.mxu0 %v211
    %374 = vmatpush.msra.mxu0 %v199
    %375 = vmatpush.msra.mxu0 %v187
    %376 = vmatpush.msra.mxu0 %v175
    %377 = vmatpush.msra.mxu0 %v163
    %378 = vmatmul.f32.gmra.mxu0 %v260
    %v379 = vpop.f32.mrf.mxu0
    %v380 = vadd.f32 %v239, %v379
    %381 = vdwg.mxu0
    %382 = vmatpush.msra.mxu0 0.0
    %383 = vmatpush.msra.mxu0 0.0
    %384 = vmatpush.msra.mxu0 0.0
    %385 = vmatpush.msra.mxu0 0.0
    %386 = vmatpush.msra.mxu0 0.0
    %387 = vmatpush.msra.mxu0 0.0
    %388 = vmatpush.msra.mxu0 0.0
    %389 = vmatpush.msra.mxu0 0.0
    %390 = vmatpush.msra.mxu0 0.0
    %391 = vmatpush.msra.mxu0 0.0
    %392 = vmatpush.msra.mxu0 %v224
    %393 = vmatpush.msra.mxu0 %v212
    %394 = vmatpush.msra.mxu0 %v200
    %395 = vmatpush.msra.mxu0 %v188
    %396 = vmatpush.msra.mxu0 %v176
    %397 = vmatpush.msra.mxu0 %v164
    %398 = vmatmul.f32.gmra.mxu0 %v260
    %v399 = vpop.f32.mrf.mxu0
    %v400 = vadd.f32 %v240, %v399
    %401 = vdwg.mxu0
    %402 = vmatpush.msra.mxu0 0.0
    %403 = vmatpush.msra.mxu0 0.0
    %404 = vmatpush.msra.mxu0 0.0
    %405 = vmatpush.msra.mxu0 0.0
    %406 = vmatpush.msra.mxu0 0.0
    %407 = vmatpush.msra.mxu0 0.0
    %408 = vmatpush.msra.mxu0 0.0
    %409 = vmatpush.msra.mxu0 0.0
    %410 = vmatpush.msra.mxu0 0.0
    %411 = vmatpush.msra.mxu0 0.0
    %412 = vmatpush.msra.mxu0 %v225
    %413 = vmatpush.msra.mxu0 %v213
    %414 = vmatpush.msra.mxu0 %v201
    %415 = vmatpush.msra.mxu0 %v189
    %416 = vmatpush.msra.mxu0 %v177
    %417 = vmatpush.msra.mxu0 %v165
    %418 = vmatmul.f32.gmra.mxu0 %v260
    %v419 = vpop.f32.mrf.mxu0
    %v420 = vadd.f32 %v241, %v419
    %421 = vdwg.mxu0
    %422 = vmatpush.msra.mxu0 0.0
    %423 = vmatpush.msra.mxu0 0.0
    %424 = vmatpush.msra.mxu0 0.0
    %425 = vmatpush.msra.mxu0 0.0
    %426 = vmatpush.msra.mxu0 0.0
    %427 = vmatpush.msra.mxu0 0.0
    %428 = vmatpush.msra.mxu0 0.0
    %429 = vmatpush.msra.mxu0 0.0
    %430 = vmatpush.msra.mxu0 0.0
    %431 = vmatpush.msra.mxu0 0.0
    %432 = vmatpush.msra.mxu0 %v226
    %433 = vmatpush.msra.mxu0 %v214
    %434 = vmatpush.msra.mxu0 %v202
    %435 = vmatpush.msra.mxu0 %v190
    %436 = vmatpush.msra.mxu0 %v178
    %437 = vmatpush.msra.mxu0 %v166
    %438 = vmatmul.f32.gmra.mxu0 %v260
    %v439 = vpop.f32.mrf.mxu0
    %v440 = vadd.f32 %v242, %v439
    %441 = vdwg.mxu0
    %442 = vmatpush.msra.mxu0 0.0
    %443 = vmatpush.msra.mxu0 0.0
    %444 = vmatpush.msra.mxu0 0.0
    %445 = vmatpush.msra.mxu0 0.0
    %446 = vmatpush.msra.mxu0 0.0
    %447 = vmatpush.msra.mxu0 0.0
    %448 = vmatpush.msra.mxu0 0.0
    %449 = vmatpush.msra.mxu0 0.0
    %450 = vmatpush.msra.mxu0 0.0
    %451 = vmatpush.msra.mxu0 0.0
    %452 = vmatpush.msra.mxu0 %v227
    %453 = vmatpush.msra.mxu0 %v215
    %454 = vmatpush.msra.mxu0 %v203
    %455 = vmatpush.msra.mxu0 %v191
    %456 = vmatpush.msra.mxu0 %v179
    %457 = vmatpush.msra.mxu0 %v167
    %458 = vmatmul.f32.gmra.mxu0 %v260
    %v459 = vpop.f32.mrf.mxu0
    %v460 = vadd.f32 %v243, %v459
    %461 = vdwg.mxu0
    %462 = vmatpush.msra.mxu0 0.0
    %463 = vmatpush.msra.mxu0 0.0
    %464 = vmatpush.msra.mxu0 0.0
    %465 = vmatpush.msra.mxu0 0.0
    %466 = vmatpush.msra.mxu0 0.0
    %467 = vmatpush.msra.mxu0 0.0
    %468 = vmatpush.msra.mxu0 0.0
    %469 = vmatpush.msra.mxu0 0.0
    %470 = vmatpush.msra.mxu0 0.0
    %471 = vmatpush.msra.mxu0 0.0
    %472 = vmatpush.msra.mxu0 %v228
    %473 = vmatpush.msra.mxu0 %v216
    %474 = vmatpush.msra.mxu0 %v204
    %475 = vmatpush.msra.mxu0 %v192
    %476 = vmatpush.msra.mxu0 %v180
    %477 = vmatpush.msra.mxu0 %v168
    %478 = vmatmul.f32.gmra.mxu0 %v260
    %v479 = vpop.f32.mrf.mxu0
    %v480 = vadd.f32 %v244, %v479
    %481 = vdwg.mxu0
    %482 = vmatpush.msra.mxu0 0.0
    %483 = vmatpush.msra.mxu0 0.0
    %484 = vmatpush.msra.mxu0 0.0
    %485 = vmatpush.msra.mxu0 0.0
    %486 = vmatpush.msra.mxu0 0.0
    %487 = vmatpush.msra.mxu0 0.0
    %488 = vmatpush.msra.mxu0 0.0
    %489 = vmatpush.msra.mxu0 0.0
    %490 = vmatpush.msra.mxu0 0.0
    %491 = vmatpush.msra.mxu0 0.0
    %492 = vmatpush.msra.mxu0 %v229
    %493 = vmatpush.msra.mxu0 %v217
    %494 = vmatpush.msra.mxu0 %v205
    %495 = vmatpush.msra.mxu0 %v193
    %496 = vmatpush.msra.mxu0 %v181
    %497 = vmatpush.msra.mxu0 %v169
    %498 = vmatmul.f32.gmra.mxu0 %v260
    %v499 = vpop.f32.mrf.mxu0
    %v500 = vadd.f32 %v245, %v499
    %501 = vdwg.mxu0
    %v502 = vmul.f32 %v280, 0.28867513
    %503 = vmatpush.xpose.msra.mxu0 0.0
    %504 = vmatpush.xpose.msra.mxu0 0.0
    %505 = vmatpush.xpose.msra.mxu0 0.0
    %506 = vmatpush.xpose.msra.mxu0 0.0
    %507 = vmatpush.xpose.msra.mxu0 0.0
    %508 = vmatpush.xpose.msra.mxu0 0.0
    %509 = vmatpush.xpose.msra.mxu0 0.0
    %510 = vmatpush.xpose.msra.mxu0 0.0
    %511 = vmatpush.xpose.msra.mxu0 0.0
    %512 = vmatpush.xpose.msra.mxu0 0.0
    %513 = vmatpush.xpose.msra.mxu0 0.0
    %514 = vmatpush.xpose.msra.mxu0 0.0
    %515 = vmatpush.xpose.msra.mxu0 0.0
    %516 = vmatpush.xpose.msra.mxu0 0.0
    %517 = vmatpush.xpose.msra.mxu0 0.0
    %518 = vmatpush.xpose.msra.mxu0 %v360
    %519 = vmatmul.f32.gmra.mxu0 %v502
    %v520 = vpop.f32.mrf.mxu0
    %v521 = vadd.f32 0.0, %v520
    %522 = vdwg.mxu0
    %vm523 = vcmask 64512
    %v524 = vsel %vm523, %v521, -inf
    %525 = vmax.xlane.f32.xlu0 %v524
    %v526 = vpop.xlane.xlu0 %525
    %v527 = vsub.f32 %v521, %v526
    %v528 = vmul.f32 %v527, 1.442695
    %v529 = vpow.pop %v528
    %v530 = vsel %vm523, %v529, 0.0
    %531 = vadd.xlane.f32.xlu0 %v530
    %v532 = vpop.xlane.xlu0 %531
    %v533 = vrcp.pop %v532
    %v534 = vmul.f32 %v529, %v533
    %v536 = vsel %vm523, %v534, 0
    %538 = vmatpush.msra.mxu0 0.0
    %539 = vmatpush.msra.mxu0 0.0
    %540 = vmatpush.msra.mxu0 0.0
    %541 = vmatpush.msra.mxu0 0.0
    %542 = vmatpush.msra.mxu0 0.0
    %543 = vmatpush.msra.mxu0 0.0
    %544 = vmatpush.msra.mxu0 0.0
    %545 = vmatpush.msra.mxu0 0.0
    %546 = vmatpush.msra.mxu0 0.0
    %547 = vmatpush.msra.mxu0 0.0
    %548 = vmatpush.msra.mxu0 0.0
    %549 = vmatpush.msra.mxu0 0.0
    %550 = vmatpush.msra.mxu0 0.0
    %551 = vmatpush.msra.mxu0 0.0
    %552 = vmatpush.msra.mxu0 0.0
    %553 = vmatpush.msra.mxu0 %v440
    %554 = vmatmul.f32.gmra.mxu0 %v536
    %v555 = vpop.f32.mrf.mxu0
    %v556 = vadd.f32 0.0, %v555
    %557 = vdwg.mxu0
    %v558 = vmul.f32 %v300, 0.28867513
    %559 = vmatpush.xpose.msra.mxu0 0.0
    %560 = vmatpush.xpose.msra.mxu0 0.0
    %561 = vmatpush.xpose.msra.mxu0 0.0
    %562 = vmatpush.xpose.msra.mxu0 0.0
    %563 = vmatpush.xpose.msra.mxu0 0.0
    %564 = vmatpush.xpose.msra.mxu0 0.0
    %565 = vmatpush.xpose.msra.mxu0 0.0
    %566 = vmatpush.xpose.msra.mxu0 0.0
    %567 = vmatpush.xpose.msra.mxu0 0.0
    %568 = vmatpush.xpose.msra.mxu0 0.0
    %569 = vmatpush.xpose.msra.mxu0 0.0
    %570 = vmatpush.xpose.msra.mxu0 0.0
    %571 = vmatpush.xpose.msra.mxu0 0.0
    %572 = vmatpush.xpose.msra.mxu0 0.0
    %573 = vmatpush.xpose.msra.mxu0 0.0
    %574 = vmatpush.xpose.msra.mxu0 %v380
    %575 = vmatmul.f32.gmra.mxu0 %v558
    %v576 = vpop.f32.mrf.mxu0
    %v577 = vadd.f32 0.0, %v576
    %578 = vdwg.mxu0
    %v579 = vsel %vm523, %v577, -inf
    %580 = vmax.xlane.f32.xlu0 %v579
    %v581 = vpop.xlane.xlu0 %580
    %v582 = vsub.f32 %v577, %v581
    %v583 = vmul.f32 %v582, 1.442695
    %v584 = vpow.pop %v583
    %v585 = vsel %vm523, %v584, 0.0
    %586 = vadd.xlane.f32.xlu0 %v585
    %v587 = vpop.xlane.xlu0 %586
    %v588 = vrcp.pop %v587
    %v589 = vmul.f32 %v584, %v588
    %v591 = vsel %vm523, %v589, 0
    %593 = vmatpush.msra.mxu0 0.0
    %594 = vmatpush.msra.mxu0 0.0
    %595 = vmatpush.msra.mxu0 0.0
    %596 = vmatpush.msra.mxu0 0.0
    %597 = vmatpush.msra.mxu0 0.0
    %598 = vmatpush.msra.mxu0 0.0
    %599 = vmatpush.msra.mxu0 0.0
    %600 = vmatpush.msra.mxu0 0.0
    %601 = vmatpush.msra.mxu0 0.0
    %602 = vmatpush.msra.mxu0 0.0
    %603 = vmatpush.msra.mxu0 0.0
    %604 = vmatpush.msra.mxu0 0.0
    %605 = vmatpush.msra.mxu0 0.0
    %606 = vmatpush.msra.mxu0 0.0
    %607 = vmatpush.msra.mxu0 0.0
    %608 = vmatpush.msra.mxu0 %v460
    %609 = vmatmul.f32.gmra.mxu0 %v591
    %v610 = vpop.f32.mrf.mxu0
    %v611 = vadd.f32 0.0, %v610
    %612 = vdwg.mxu0
    %v613 = vmul.f32 %v320, 0.28867513
    %614 = vmatpush.xpose.msra.mxu0 0.0
    %615 = vmatpush.xpose.msra.mxu0 0.0
    %616 = vmatpush.xpose.msra.mxu0 0.0
    %617 = vmatpush.xpose.msra.mxu0 0.0
    %618 = vmatpush.xpose.msra.mxu0 0.0
    %619 = vmatpush.xpose.msra.mxu0 0.0
    %620 = vmatpush.xpose.msra.mxu0 0.0
    %621 = vmatpush.xpose.msra.mxu0 0.0
    %622 = vmatpush.xpose.msra.mxu0 0.0
    %623 = vmatpush.xpose.msra.mxu0 0.0
    %624 = vmatpush.xpose.msra.mxu0 0.0
    %625 = vmatpush.xpose.msra.mxu0 0.0
    %626 = vmatpush.xpose.msra.mxu0 0.0
    %627 = vmatpush.xpose.msra.mxu0 0.0
    %628 = vmatpush.xpose.msra.mxu0 0.0
    %629 = vmatpush.xpose.msra.mxu0 %v400
    %630 = vmatmul.f32.gmra.mxu0 %v613
    %v631 = vpop.f32.mrf.mxu0
    %v632 = vadd.f32 0.0, %v631
    %633 = vdwg.mxu0
    %v634 = vsel %vm523, %v632, -inf
    %635 = vmax.xlane.f32.xlu0 %v634
    %v636 = vpop.xlane.xlu0 %635
    %v637 = vsub.f32 %v632, %v636
    %v638 = vmul.f32 %v637, 1.442695
    %v639 = vpow.pop %v638
    %v640 = vsel %vm523, %v639, 0.0
    %641 = vadd.xlane.f32.xlu0 %v640
    %v642 = vpop.xlane.xlu0 %641
    %v643 = vrcp.pop %v642
    %v644 = vmul.f32 %v639, %v643
    %v646 = vsel %vm523, %v644, 0
    %648 = vmatpush.msra.mxu0 0.0
    %649 = vmatpush.msra.mxu0 0.0
    %650 = vmatpush.msra.mxu0 0.0
    %651 = vmatpush.msra.mxu0 0.0
    %652 = vmatpush.msra.mxu0 0.0
    %653 = vmatpush.msra.mxu0 0.0
    %654 = vmatpush.msra.mxu0 0.0
    %655 = vmatpush.msra.mxu0 0.0
    %656 = vmatpush.msra.mxu0 0.0
    %657 = vmatpush.msra.mxu0 0.0
    %658 = vmatpush.msra.mxu0 0.0
    %659 = vmatpush.msra.mxu0 0.0
    %660 = vmatpush.msra.mxu0 0.0
    %661 = vmatpush.msra.mxu0 0.0
    %662 = vmatpush.msra.mxu0 0.0
    %663 = vmatpush.msra.mxu0 %v480
    %664 = vmatmul.f32.gmra.mxu0 %v646
    %v665 = vpop.f32.mrf.mxu0
    %v666 = vadd.f32 0.0, %v665
    %667 = vdwg.mxu0
    %v668 = vmul.f32 %v340, 0.28867513
    %669 = vmatpush.xpose.msra.mxu0 0.0
    %670 = vmatpush.xpose.msra.mxu0 0.0
    %671 = vmatpush.xpose.msra.mxu0 0.0
    %672 = vmatpush.xpose.msra.mxu0 0.0
    %673 = vmatpush.xpose.msra.mxu0 0.0
    %674 = vmatpush.xpose.msra.mxu0 0.0
    %675 = vmatpush.xpose.msra.mxu0 0.0
    %676 = vmatpush.xpose.msra.mxu0 0.0
    %677 = vmatpush.xpose.msra.mxu0 0.0
    %678 = vmatpush.xpose.msra.mxu0 0.0
    %679 = vmatpush.xpose.msra.mxu0 0.0
    %680 = vmatpush.xpose.msra.mxu0 0.0
    %681 = vmatpush.xpose.msra.mxu0 0.0
    %682 = vmatpush.xpose.msra.mxu0 0.0
    %683 = vmatpush.xpose.msra.mxu0 0.0
    %684 = vmatpush.xpose.msra.mxu0 %v420
    %685 = vmatmul.f32.gmra.mxu0 %v668
    %v686 = vpop.f32.mrf.mxu0
    %v687 = vadd.f32 0.0, %v686
    %688 = vdwg.mxu0
    %v689 = vsel %vm523, %v687, -inf
    %690 = vmax.xlane.f32.xlu0 %v689
    %v691 = vpop.xlane.xlu0 %690
    %v692 = vsub.f32 %v687, %v691
    %v693 = vmul.f32 %v692, 1.442695
    %v694 = vpow.pop %v693
    %v695 = vsel %vm523, %v694, 0.0
    %696 = vadd.xlane.f32.xlu0 %v695
    %v697 = vpop.xlane.xlu0 %696
    %v698 = vrcp.pop %v697
    %v699 = vmul.f32 %v694, %v698
    %v701 = vsel %vm523, %v699, 0
    %703 = vmatpush.msra.mxu0 0.0
    %704 = vmatpush.msra.mxu0 0.0
    %705 = vmatpush.msra.mxu0 0.0
    %706 = vmatpush.msra.mxu0 0.0
    %707 = vmatpush.msra.mxu0 0.0
    %708 = vmatpush.msra.mxu0 0.0
    %709 = vmatpush.msra.mxu0 0.0
    %710 = vmatpush.msra.mxu0 0.0
    %711 = vmatpush.msra.mxu0 0.0
    %712 = vmatpush.msra.mxu0 0.0
    %713 = vmatpush.msra.mxu0 0.0
    %714 = vmatpush.msra.mxu0 0.0
    %715 = vmatpush.msra.mxu0 0.0
    %716 = vmatpush.msra.mxu0 0.0
    %717 = vmatpush.msra.mxu0 0.0
    %718 = vmatpush.msra.mxu0 %v500
    %719 = vmatmul.f32.gmra.mxu0 %v701
    %v720 = vpop.f32.mrf.mxu0
    %v721 = vadd.f32 0.0, %v720
    %722 = vdwg.mxu0
    %v723 = vld [vmem:[%s8] sm:$0xff]
    %v724 = vld [vmem:[%s8 + $0x8] sm:$0xff]
    %v725 = vld [vmem:[%s8 + $0x10] sm:$0xff]
    %v726 = vld [vmem:[%s8 + $0x18] sm:$0xff]
    %v727 = vld [vmem:[%s8 + $0x20] sm:$0xff]
    %v728 = vld [vmem:[%s8 + $0x28] sm:$0xff]
    %v729 = vld [vmem:[%s8 + $0x30] sm:$0xff]
    %v730 = vld [vmem:[%s8 + $0x38] sm:$0xff]
    %v731 = vld [vmem:[%s8 + $0x40] sm:$0xff]
    %v732 = vld [vmem:[%s8 + $0x48] sm:$0xff]
    %v733 = vld [vmem:[%s8 + $0x50] sm:$0xff]
    %v734 = vld [vmem:[%s8 + $0x58] sm:$0xff]
    %v735 = vld [vmem:[%s8 + $0x60] sm:$0xff]
    %v736 = vld [vmem:[%s8 + $0x68] sm:$0xff]
    %v737 = vld [vmem:[%s8 + $0x70] sm:$0xff]
    %v738 = vld [vmem:[%s8 + $0x78] sm:$0xff]
    %v739 = vld [vmem:[%s8 + $0x80] sm:$0xff]
    %v740 = vld [vmem:[%s8 + $0x88] sm:$0xff]
    %v741 = vld [vmem:[%s8 + $0x90] sm:$0xff]
    %v742 = vld [vmem:[%s8 + $0x98] sm:$0xff]
    %v743 = vld [vmem:[%s8 + $0xa0] sm:$0xff]
    %v744 = vld [vmem:[%s8 + $0xa8] sm:$0xff]
    %v745 = vld [vmem:[%s8 + $0xb0] sm:$0xff]
    %v746 = vld [vmem:[%s8 + $0xb8] sm:$0xff]
    %v747 = vld [vmem:[%s8 + $0xc0] sm:$0xff]
    %v748 = vld [vmem:[%s8 + $0xc8] sm:$0xff]
    %v749 = vld [vmem:[%s8 + $0xd0] sm:$0xff]
    %v750 = vld [vmem:[%s8 + $0xd8] sm:$0xff]
    %v751 = vld [vmem:[%s8 + $0xe0] sm:$0xff]
    %v752 = vld [vmem:[%s8 + $0xe8] sm:$0xff]
    %v753 = vld [vmem:[%s8 + $0xf0] sm:$0xff]
    %v754 = vld [vmem:[%s8 + $0xf8] sm:$0xff]
    %v755 = vld [vmem:[%s8 + $0x100] sm:$0xff]
    %v756 = vld [vmem:[%s8 + $0x108] sm:$0xff]
    %v757 = vld [vmem:[%s8 + $0x110] sm:$0xff]
    %v758 = vld [vmem:[%s8 + $0x118] sm:$0xff]
    %v759 = vld [vmem:[%s8 + $0x120] sm:$0xff]
    %v760 = vld [vmem:[%s8 + $0x128] sm:$0xff]
    %v761 = vld [vmem:[%s8 + $0x130] sm:$0xff]
    %v762 = vld [vmem:[%s8 + $0x138] sm:$0xff]
    %v763 = vld [vmem:[%s8 + $0x140] sm:$0xff]
    %v764 = vld [vmem:[%s8 + $0x148] sm:$0xff]
    %v765 = vld [vmem:[%s8 + $0x150] sm:$0xff]
    %v766 = vld [vmem:[%s8 + $0x158] sm:$0xff]
    %v767 = vld [vmem:[%s8 + $0x160] sm:$0xff]
    %v768 = vld [vmem:[%s8 + $0x168] sm:$0xff]
    %v769 = vld [vmem:[%s8 + $0x170] sm:$0xff]
    %v770 = vld [vmem:[%s8 + $0x178] sm:$0xff]
    %v771 = vld [vmem:[%s8 + $0x180] sm:$0xff]
    %v772 = vld [vmem:[%s8 + $0x188] sm:$0xff]
    %v773 = vld [vmem:[%s8 + $0x190] sm:$0xff]
    %v774 = vld [vmem:[%s8 + $0x198] sm:$0xff]
    %v775 = vld [vmem:[%s8 + $0x1a0] sm:$0xff]
    %v776 = vld [vmem:[%s8 + $0x1a8] sm:$0xff]
    %v777 = vld [vmem:[%s8 + $0x1b0] sm:$0xff]
    %v778 = vld [vmem:[%s8 + $0x1b8] sm:$0xff]
    %v779 = vld [vmem:[%s8 + $0x1c0] sm:$0xff]
    %v780 = vld [vmem:[%s8 + $0x1c8] sm:$0xff]
    %v781 = vld [vmem:[%s8 + $0x1d0] sm:$0xff]
    %v782 = vld [vmem:[%s8 + $0x1d8] sm:$0xff]
    %v783 = vld [vmem:[%s8 + $0x1e0] sm:$0xff]
    %v784 = vld [vmem:[%s8 + $0x1e8] sm:$0xff]
    %v785 = vld [vmem:[%s8 + $0x1f0] sm:$0xff]
    %v786 = vld [vmem:[%s8 + $0x1f8] sm:$0xff]
    %v787 = vld [vmem:[%s9] sm:$0x1]
    %v789 = vperm.slane %v787, 0
    %791 = vmatpush.msra.mxu0 %v738
    %792 = vmatpush.msra.mxu0 %v737
    %793 = vmatpush.msra.mxu0 %v736
    %794 = vmatpush.msra.mxu0 %v735
    %795 = vmatpush.msra.mxu0 %v734
    %796 = vmatpush.msra.mxu0 %v733
    %797 = vmatpush.msra.mxu0 %v732
    %798 = vmatpush.msra.mxu0 %v731
    %799 = vmatpush.msra.mxu0 %v730
    %800 = vmatpush.msra.mxu0 %v729
    %801 = vmatpush.msra.mxu0 %v728
    %802 = vmatpush.msra.mxu0 %v727
    %803 = vmatpush.msra.mxu0 %v726
    %804 = vmatpush.msra.mxu0 %v725
    %805 = vmatpush.msra.mxu0 %v724
    %806 = vmatpush.msra.mxu0 %v723
    %807 = vmatmul.f32.gmra.mxu0 %v556
    %v808 = vpop.f32.mrf.mxu0
    %v809 = vadd.f32 %v789, %v808
    %810 = vdwg.mxu0
    %811 = vmatpush.msra.mxu0 %v754
    %812 = vmatpush.msra.mxu0 %v753
    %813 = vmatpush.msra.mxu0 %v752
    %814 = vmatpush.msra.mxu0 %v751
    %815 = vmatpush.msra.mxu0 %v750
    %816 = vmatpush.msra.mxu0 %v749
    %817 = vmatpush.msra.mxu0 %v748
    %818 = vmatpush.msra.mxu0 %v747
    %819 = vmatpush.msra.mxu0 %v746
    %820 = vmatpush.msra.mxu0 %v745
    %821 = vmatpush.msra.mxu0 %v744
    %822 = vmatpush.msra.mxu0 %v743
    %823 = vmatpush.msra.mxu0 %v742
    %824 = vmatpush.msra.mxu0 %v741
    %825 = vmatpush.msra.mxu0 %v740
    %826 = vmatpush.msra.mxu0 %v739
    %827 = vmatmul.f32.gmra.mxu0 %v611
    %v828 = vpop.f32.mrf.mxu0
    %v829 = vadd.f32 %v809, %v828
    %830 = vdwg.mxu0
    %831 = vmatpush.msra.mxu0 %v770
    %832 = vmatpush.msra.mxu0 %v769
    %833 = vmatpush.msra.mxu0 %v768
    %834 = vmatpush.msra.mxu0 %v767
    %835 = vmatpush.msra.mxu0 %v766
    %836 = vmatpush.msra.mxu0 %v765
    %837 = vmatpush.msra.mxu0 %v764
    %838 = vmatpush.msra.mxu0 %v763
    %839 = vmatpush.msra.mxu0 %v762
    %840 = vmatpush.msra.mxu0 %v761
    %841 = vmatpush.msra.mxu0 %v760
    %842 = vmatpush.msra.mxu0 %v759
    %843 = vmatpush.msra.mxu0 %v758
    %844 = vmatpush.msra.mxu0 %v757
    %845 = vmatpush.msra.mxu0 %v756
    %846 = vmatpush.msra.mxu0 %v755
    %847 = vmatmul.f32.gmra.mxu0 %v666
    %v848 = vpop.f32.mrf.mxu0
    %v849 = vadd.f32 %v829, %v848
    %850 = vdwg.mxu0
    %851 = vmatpush.msra.mxu0 %v786
    %852 = vmatpush.msra.mxu0 %v785
    %853 = vmatpush.msra.mxu0 %v784
    %854 = vmatpush.msra.mxu0 %v783
    %855 = vmatpush.msra.mxu0 %v782
    %856 = vmatpush.msra.mxu0 %v781
    %857 = vmatpush.msra.mxu0 %v780
    %858 = vmatpush.msra.mxu0 %v779
    %859 = vmatpush.msra.mxu0 %v778
    %860 = vmatpush.msra.mxu0 %v777
    %861 = vmatpush.msra.mxu0 %v776
    %862 = vmatpush.msra.mxu0 %v775
    %863 = vmatpush.msra.mxu0 %v774
    %864 = vmatpush.msra.mxu0 %v773
    %865 = vmatpush.msra.mxu0 %v772
    %866 = vmatpush.msra.mxu0 %v771
    %867 = vmatmul.f32.gmra.mxu0 %v721
    %v868 = vpop.f32.mrf.mxu0
    %v869 = vadd.f32 %v849, %v868
    %870 = vdwg.mxu0
    %v871 = vadd.f32 %v157, %v869
    %v872 = vld [vmem:[%s14] sm:$0x1]
    %v873 = vld [vmem:[%s15] sm:$0x1]
    %v874 = vsel %vm258, %v871, 0.0
    %875 = vadd.xlane.f32.xlu0 %v874
    %v876 = vpop.xlane.xlu0 %875
    %v877 = vrcp.pop 48.0
    %v878 = vmul.f32 48.0, %v877
    %v879 = vsub.f32 1.0, %v878
    %v880 = vmul.f32 %v877, %v879
    %v881 = vadd.f32 %v877, %v880
    %vm882 = vweird.f32 %v877
    %v883 = vsel %vm882, %v877, %v881
    %v884 = vmul.f32 %v876, %v883
    %v885 = vsub.f32 %v871, %v884
    %v886 = vmul.f32 %v885, %v885
    %v887 = vsel %vm258, %v886, 0.0
    %888 = vadd.xlane.f32.xlu0 %v887
    %v889 = vpop.xlane.xlu0 %888
    %v890 = vmul.f32 %v889, %v883
    %v891 = vadd.f32 %v890, 1e-05
    %v892 = vrsqrt.pop %v891
    %v893 = vmul.f32 %v892, %v891
    %v894 = vmul.f32 %v893, %v892
    %v895 = vmul.f32 0.5, %v894
    %v896 = vsub.f32 1.5, %v895
    %v897 = vmul.f32 %v892, %v896
    %vm898 = vweird.f32 %v891
    %vm899 = vweird.f32 %v892
    %vm900 = vmor %vm898, %vm899
    %v901 = vsel %vm900, %v892, %v897
    %v902 = vmul.f32 %v885, %v901
    %v904 = vperm.slane %v872, 0
    %v906 = vmul.f32 %v902, %v904
    %v908 = vperm.slane %v873, 0
    %v910 = vadd.f32 %v906, %v908
    %v911 = vld [vmem:[%s10] sm:$0xff]
    %v912 = vld [vmem:[%s10 + $0x8] sm:$0xff]
    %v913 = vld [vmem:[%s10 + $0x10] sm:$0xff]
    %v914 = vld [vmem:[%s10 + $0x18] sm:$0xff]
    %v915 = vld [vmem:[%s10 + $0x20] sm:$0xff]
    %v916 = vld [vmem:[%s10 + $0x28] sm:$0xff]
    %v917 = vld [vmem:[%s11] sm:$0x1]
    %v919 = vperm.slane %v917, 0
    %v922 = vsel %vm258, %v910, 0
    %924 = vmatpush.msra.mxu0 0.0
    %925 = vmatpush.msra.mxu0 0.0
    %926 = vmatpush.msra.mxu0 0.0
    %927 = vmatpush.msra.mxu0 0.0
    %928 = vmatpush.msra.mxu0 0.0
    %929 = vmatpush.msra.mxu0 0.0
    %930 = vmatpush.msra.mxu0 0.0
    %931 = vmatpush.msra.mxu0 0.0
    %932 = vmatpush.msra.mxu0 0.0
    %933 = vmatpush.msra.mxu0 0.0
    %934 = vmatpush.msra.mxu0 %v916
    %935 = vmatpush.msra.mxu0 %v915
    %936 = vmatpush.msra.mxu0 %v914
    %937 = vmatpush.msra.mxu0 %v913
    %938 = vmatpush.msra.mxu0 %v912
    %939 = vmatpush.msra.mxu0 %v911
    %940 = vmatmul.f32.gmra.mxu0 %v922
    %v941 = vpop.f32.mrf.mxu0
    %v942 = vadd.f32 %v919, %v941
    %943 = vdwg.mxu0
    %v944 = vmax.f32 %v942, 0.0
    %v945 = vld [vmem:[%s12] sm:$0xff]
    %v946 = vld [vmem:[%s12 + $0x8] sm:$0xff]
    %v947 = vld [vmem:[%s12 + $0x10] sm:$0xff]
    %v948 = vld [vmem:[%s12 + $0x18] sm:$0xff]
    %v949 = vld [vmem:[%s12 + $0x20] sm:$0xff]
    %v950 = vld [vmem:[%s12 + $0x28] sm:$0xff]
    %v951 = vld [vmem:[%s13] sm:$0x1]
    %v953 = vperm.slane %v951, 0
    %v956 = vsel %vm258, %v944, 0
    %958 = vmatpush.msra.mxu0 0.0
    %959 = vmatpush.msra.mxu0 0.0
    %960 = vmatpush.msra.mxu0 0.0
    %961 = vmatpush.msra.mxu0 0.0
    %962 = vmatpush.msra.mxu0 0.0
    %963 = vmatpush.msra.mxu0 0.0
    %964 = vmatpush.msra.mxu0 0.0
    %965 = vmatpush.msra.mxu0 0.0
    %966 = vmatpush.msra.mxu0 0.0
    %967 = vmatpush.msra.mxu0 0.0
    %968 = vmatpush.msra.mxu0 %v950
    %969 = vmatpush.msra.mxu0 %v949
    %970 = vmatpush.msra.mxu0 %v948
    %971 = vmatpush.msra.mxu0 %v947
    %972 = vmatpush.msra.mxu0 %v946
    %973 = vmatpush.msra.mxu0 %v945
    %974 = vmatmul.f32.gmra.mxu0 %v956
    %v975 = vpop.f32.mrf.mxu0
    %v976 = vadd.f32 %v953, %v975
    %977 = vdwg.mxu0
    %v978 = vadd.f32 %v910, %v976
    %v979 = vld [vmem:[%s16] sm:$0x1]
    %v980 = vld [vmem:[%s17] sm:$0x1]
    %v981 = vsel %vm258, %v978, 0.0
    %982 = vadd.xlane.f32.xlu0 %v981
    %v983 = vpop.xlane.xlu0 %982
    %v984 = vmul.f32 %v983, %v883
    %v985 = vsub.f32 %v978, %v984
    %v986 = vmul.f32 %v985, %v985
    %v987 = vsel %vm258, %v986, 0.0
    %988 = vadd.xlane.f32.xlu0 %v987
    %v989 = vpop.xlane.xlu0 %988
    %v990 = vmul.f32 %v989, %v883
    %v991 = vadd.f32 %v990, 1e-05
    %v992 = vrsqrt.pop %v991
    %v993 = vmul.f32 %v992, %v991
    %v994 = vmul.f32 %v993, %v992
    %v995 = vmul.f32 0.5, %v994
    %v996 = vsub.f32 1.5, %v995
    %v997 = vmul.f32 %v992, %v996
    %vm998 = vweird.f32 %v991
    %vm999 = vweird.f32 %v992
    %vm1000 = vmor %vm998, %vm999
    %v1001 = vsel %vm1000, %v992, %v997
    %v1002 = vmul.f32 %v985, %v1001
    %v1004 = vperm.slane %v979, 0
    %v1006 = vmul.f32 %v1002, %v1004
    %v1008 = vperm.slane %v980, 0
    %v1010 = vadd.f32 %v1006, %v1008
    %v1011 = vld [vmem:[%s18] sm:$0xff]
    %v1012 = vld [vmem:[%s18 + $0x8] sm:$0xff]
    %v1013 = vld [vmem:[%s18 + $0x10] sm:$0xff]
    %v1014 = vld [vmem:[%s18 + $0x18] sm:$0xff]
    %v1015 = vld [vmem:[%s18 + $0x20] sm:$0xff]
    %v1016 = vld [vmem:[%s18 + $0x28] sm:$0xff]
    %v1017 = vld [vmem:[%s19] sm:$0x1]
    %v1019 = vperm.slane %v1017, 0
    %v1022 = vsel %vm258, %v1010, 0
    %1024 = vmatpush.msra.mxu0 0.0
    %1025 = vmatpush.msra.mxu0 0.0
    %1026 = vmatpush.msra.mxu0 0.0
    %1027 = vmatpush.msra.mxu0 0.0
    %1028 = vmatpush.msra.mxu0 0.0
    %1029 = vmatpush.msra.mxu0 0.0
    %1030 = vmatpush.msra.mxu0 0.0
    %1031 = vmatpush.msra.mxu0 0.0
    %1032 = vmatpush.msra.mxu0 0.0
    %1033 = vmatpush.msra.mxu0 0.0
    %1034 = vmatpush.msra.mxu0 %v1016
    %1035 = vmatpush.msra.mxu0 %v1015
    %1036 = vmatpush.msra.mxu0 %v1014
    %1037 = vmatpush.msra.mxu0 %v1013
    %1038 = vmatpush.msra.mxu0 %v1012
    %1039 = vmatpush.msra.mxu0 %v1011
    %1040 = vmatmul.f32.gmra.mxu0 %v1022
    %v1041 = vpop.f32.mrf.mxu0
    %v1042 = vadd.f32 %v1019, %v1041
    %1043 = vdwg.mxu0
    %1044 = vst.msk [vmem:[#allocation2] sm:$0xff] %vm125, %v1042
    %v1045 = vld [vmem:[#allocation2] sm:$0xff]
    %s1046 = scalar_lea.vmem %s6, 576
    %v1047 = vld [vmem:[%s1046] sm:$0xff]
    %v1048 = vld [vmem:[%s1046 + $0x8] sm:$0xff]
    %v1049 = vld [vmem:[%s1046 + $0x10] sm:$0xff]
    %v1050 = vld [vmem:[%s1046 + $0x18] sm:$0xff]
    %v1051 = vld [vmem:[%s1046 + $0x20] sm:$0xff]
    %v1052 = vld [vmem:[%s1046 + $0x28] sm:$0xff]
    %v1053 = vld [vmem:[%s1046 + $0x30] sm:$0xff]
    %v1054 = vld [vmem:[%s1046 + $0x38] sm:$0xff]
    %v1055 = vld [vmem:[%s1046 + $0x40] sm:$0xff]
    %v1056 = vld [vmem:[%s1046 + $0x48] sm:$0xff]
    %v1057 = vld [vmem:[%s1046 + $0x50] sm:$0xff]
    %v1058 = vld [vmem:[%s1046 + $0x58] sm:$0xff]
    %v1059 = vld [vmem:[%s1046 + $0x60] sm:$0xff]
    %v1060 = vld [vmem:[%s1046 + $0x68] sm:$0xff]
    %v1061 = vld [vmem:[%s1046 + $0x70] sm:$0xff]
    %v1062 = vld [vmem:[%s1046 + $0x78] sm:$0xff]
    %v1063 = vld [vmem:[%s1046 + $0x80] sm:$0xff]
    %v1064 = vld [vmem:[%s1046 + $0x88] sm:$0xff]
    %v1065 = vld [vmem:[%s1046 + $0x90] sm:$0xff]
    %v1066 = vld [vmem:[%s1046 + $0x98] sm:$0xff]
    %v1067 = vld [vmem:[%s1046 + $0xa0] sm:$0xff]
    %v1068 = vld [vmem:[%s1046 + $0xa8] sm:$0xff]
    %v1069 = vld [vmem:[%s1046 + $0xb0] sm:$0xff]
    %v1070 = vld [vmem:[%s1046 + $0xb8] sm:$0xff]
    %v1071 = vld [vmem:[%s1046 + $0xc0] sm:$0xff]
    %v1072 = vld [vmem:[%s1046 + $0xc8] sm:$0xff]
    %v1073 = vld [vmem:[%s1046 + $0xd0] sm:$0xff]
    %v1074 = vld [vmem:[%s1046 + $0xd8] sm:$0xff]
    %v1075 = vld [vmem:[%s1046 + $0xe0] sm:$0xff]
    %v1076 = vld [vmem:[%s1046 + $0xe8] sm:$0xff]
    %v1077 = vld [vmem:[%s1046 + $0xf0] sm:$0xff]
    %v1078 = vld [vmem:[%s1046 + $0xf8] sm:$0xff]
    %v1079 = vld [vmem:[%s1046 + $0x100] sm:$0xff]
    %v1080 = vld [vmem:[%s1046 + $0x108] sm:$0xff]
    %v1081 = vld [vmem:[%s1046 + $0x110] sm:$0xff]
    %v1082 = vld [vmem:[%s1046 + $0x118] sm:$0xff]
    %v1083 = vld [vmem:[%s1046 + $0x120] sm:$0xff]
    %v1084 = vld [vmem:[%s1046 + $0x128] sm:$0xff]
    %v1085 = vld [vmem:[%s1046 + $0x130] sm:$0xff]
    %v1086 = vld [vmem:[%s1046 + $0x138] sm:$0xff]
    %v1087 = vld [vmem:[%s1046 + $0x140] sm:$0xff]
    %v1088 = vld [vmem:[%s1046 + $0x148] sm:$0xff]
    %v1089 = vld [vmem:[%s1046 + $0x150] sm:$0xff]
    %v1090 = vld [vmem:[%s1046 + $0x158] sm:$0xff]
    %v1091 = vld [vmem:[%s1046 + $0x160] sm:$0xff]
    %v1092 = vld [vmem:[%s1046 + $0x168] sm:$0xff]
    %v1093 = vld [vmem:[%s1046 + $0x170] sm:$0xff]
    %v1094 = vld [vmem:[%s1046 + $0x178] sm:$0xff]
    %v1095 = vld [vmem:[%s1046 + $0x180] sm:$0xff]
    %v1096 = vld [vmem:[%s1046 + $0x188] sm:$0xff]
    %v1097 = vld [vmem:[%s1046 + $0x190] sm:$0xff]
    %v1098 = vld [vmem:[%s1046 + $0x198] sm:$0xff]
    %v1099 = vld [vmem:[%s1046 + $0x1a0] sm:$0xff]
    %v1100 = vld [vmem:[%s1046 + $0x1a8] sm:$0xff]
    %v1101 = vld [vmem:[%s1046 + $0x1b0] sm:$0xff]
    %v1102 = vld [vmem:[%s1046 + $0x1b8] sm:$0xff]
    %v1103 = vld [vmem:[%s1046 + $0x1c0] sm:$0xff]
    %v1104 = vld [vmem:[%s1046 + $0x1c8] sm:$0xff]
    %v1105 = vld [vmem:[%s1046 + $0x1d0] sm:$0xff]
    %v1106 = vld [vmem:[%s1046 + $0x1d8] sm:$0xff]
    %v1107 = vld [vmem:[%s1046 + $0x1e0] sm:$0xff]
    %v1108 = vld [vmem:[%s1046 + $0x1e8] sm:$0xff]
    %v1109 = vld [vmem:[%s1046 + $0x1f0] sm:$0xff]
    %v1110 = vld [vmem:[%s1046 + $0x1f8] sm:$0xff]
    %v1111 = vld [vmem:[%s1046 + $0x200] sm:$0xff]
    %v1112 = vld [vmem:[%s1046 + $0x208] sm:$0xff]
    %v1113 = vld [vmem:[%s1046 + $0x210] sm:$0xff]
    %v1114 = vld [vmem:[%s1046 + $0x218] sm:$0xff]
    %v1115 = vld [vmem:[%s1046 + $0x220] sm:$0xff]
    %v1116 = vld [vmem:[%s1046 + $0x228] sm:$0xff]
    %v1117 = vld [vmem:[%s1046 + $0x230] sm:$0xff]
    %v1118 = vld [vmem:[%s1046 + $0x238] sm:$0xff]
    %s1119 = scalar_lea.vmem %s7, 12
    %v1120 = vld [vmem:[%s1119] sm:$0xff]
    %v1121 = vld [vmem:[%s1119 + $0x8] sm:$0xf]
    %v1124 = vperm.slane %v1120, 0
    %v1125 = vperm.slane %v1120, 1
    %v1126 = vperm.slane %v1120, 2
    %v1127 = vperm.slane %v1120, 3
    %v1128 = vperm.slane %v1120, 4
    %v1129 = vperm.slane %v1120, 5
    %v1130 = vperm.slane %v1120, 6
    %v1131 = vperm.slane %v1120, 7
    %v1132 = vperm.slane %v1121, 0
    %v1133 = vperm.slane %v1121, 1
    %v1134 = vperm.slane %v1121, 2
    %v1135 = vperm.slane %v1121, 3
    %v1149 = vsel %vm258, %v1045, 0
    %1151 = vmatpush.msra.mxu0 0.0
    %1152 = vmatpush.msra.mxu0 0.0
    %1153 = vmatpush.msra.mxu0 0.0
    %1154 = vmatpush.msra.mxu0 0.0
    %1155 = vmatpush.msra.mxu0 0.0
    %1156 = vmatpush.msra.mxu0 0.0
    %1157 = vmatpush.msra.mxu0 0.0
    %1158 = vmatpush.msra.mxu0 0.0
    %1159 = vmatpush.msra.mxu0 0.0
    %1160 = vmatpush.msra.mxu0 0.0
    %1161 = vmatpush.msra.mxu0 %v1107
    %1162 = vmatpush.msra.mxu0 %v1095
    %1163 = vmatpush.msra.mxu0 %v1083
    %1164 = vmatpush.msra.mxu0 %v1071
    %1165 = vmatpush.msra.mxu0 %v1059
    %1166 = vmatpush.msra.mxu0 %v1047
    %1167 = vmatmul.f32.gmra.mxu0 %v1149
    %v1168 = vpop.f32.mrf.mxu0
    %v1169 = vadd.f32 %v1124, %v1168
    %1170 = vdwg.mxu0
    %1171 = vmatpush.msra.mxu0 0.0
    %1172 = vmatpush.msra.mxu0 0.0
    %1173 = vmatpush.msra.mxu0 0.0
    %1174 = vmatpush.msra.mxu0 0.0
    %1175 = vmatpush.msra.mxu0 0.0
    %1176 = vmatpush.msra.mxu0 0.0
    %1177 = vmatpush.msra.mxu0 0.0
    %1178 = vmatpush.msra.mxu0 0.0
    %1179 = vmatpush.msra.mxu0 0.0
    %1180 = vmatpush.msra.mxu0 0.0
    %1181 = vmatpush.msra.mxu0 %v1108
    %1182 = vmatpush.msra.mxu0 %v1096
    %1183 = vmatpush.msra.mxu0 %v1084
    %1184 = vmatpush.msra.mxu0 %v1072
    %1185 = vmatpush.msra.mxu0 %v1060
    %1186 = vmatpush.msra.mxu0 %v1048
    %1187 = vmatmul.f32.gmra.mxu0 %v1149
    %v1188 = vpop.f32.mrf.mxu0
    %v1189 = vadd.f32 %v1125, %v1188
    %1190 = vdwg.mxu0
    %1191 = vmatpush.msra.mxu0 0.0
    %1192 = vmatpush.msra.mxu0 0.0
    %1193 = vmatpush.msra.mxu0 0.0
    %1194 = vmatpush.msra.mxu0 0.0
    %1195 = vmatpush.msra.mxu0 0.0
    %1196 = vmatpush.msra.mxu0 0.0
    %1197 = vmatpush.msra.mxu0 0.0
    %1198 = vmatpush.msra.mxu0 0.0
    %1199 = vmatpush.msra.mxu0 0.0
    %1200 = vmatpush.msra.mxu0 0.0
    %1201 = vmatpush.msra.mxu0 %v1109
    %1202 = vmatpush.msra.mxu0 %v1097
    %1203 = vmatpush.msra.mxu0 %v1085
    %1204 = vmatpush.msra.mxu0 %v1073
    %1205 = vmatpush.msra.mxu0 %v1061
    %1206 = vmatpush.msra.mxu0 %v1049
    %1207 = vmatmul.f32.gmra.mxu0 %v1149
    %v1208 = vpop.f32.mrf.mxu0
    %v1209 = vadd.f32 %v1126, %v1208
    %1210 = vdwg.mxu0
    %1211 = vmatpush.msra.mxu0 0.0
    %1212 = vmatpush.msra.mxu0 0.0
    %1213 = vmatpush.msra.mxu0 0.0
    %1214 = vmatpush.msra.mxu0 0.0
    %1215 = vmatpush.msra.mxu0 0.0
    %1216 = vmatpush.msra.mxu0 0.0
    %1217 = vmatpush.msra.mxu0 0.0
    %1218 = vmatpush.msra.mxu0 0.0
    %1219 = vmatpush.msra.mxu0 0.0
    %1220 = vmatpush.msra.mxu0 0.0
    %1221 = vmatpush.msra.mxu0 %v1110
    %1222 = vmatpush.msra.mxu0 %v1098
    %1223 = vmatpush.msra.mxu0 %v1086
    %1224 = vmatpush.msra.mxu0 %v1074
    %1225 = vmatpush.msra.mxu0 %v1062
    %1226 = vmatpush.msra.mxu0 %v1050
    %1227 = vmatmul.f32.gmra.mxu0 %v1149
    %v1228 = vpop.f32.mrf.mxu0
    %v1229 = vadd.f32 %v1127, %v1228
    %1230 = vdwg.mxu0
    %1231 = vmatpush.msra.mxu0 0.0
    %1232 = vmatpush.msra.mxu0 0.0
    %1233 = vmatpush.msra.mxu0 0.0
    %1234 = vmatpush.msra.mxu0 0.0
    %1235 = vmatpush.msra.mxu0 0.0
    %1236 = vmatpush.msra.mxu0 0.0
    %1237 = vmatpush.msra.mxu0 0.0
    %1238 = vmatpush.msra.mxu0 0.0
    %1239 = vmatpush.msra.mxu0 0.0
    %1240 = vmatpush.msra.mxu0 0.0
    %1241 = vmatpush.msra.mxu0 %v1111
    %1242 = vmatpush.msra.mxu0 %v1099
    %1243 = vmatpush.msra.mxu0 %v1087
    %1244 = vmatpush.msra.mxu0 %v1075
    %1245 = vmatpush.msra.mxu0 %v1063
    %1246 = vmatpush.msra.mxu0 %v1051
    %1247 = vmatmul.f32.gmra.mxu0 %v1149
    %v1248 = vpop.f32.mrf.mxu0
    %v1249 = vadd.f32 %v1128, %v1248
    %1250 = vdwg.mxu0
    %1251 = vmatpush.msra.mxu0 0.0
    %1252 = vmatpush.msra.mxu0 0.0
    %1253 = vmatpush.msra.mxu0 0.0
    %1254 = vmatpush.msra.mxu0 0.0
    %1255 = vmatpush.msra.mxu0 0.0
    %1256 = vmatpush.msra.mxu0 0.0
    %1257 = vmatpush.msra.mxu0 0.0
    %1258 = vmatpush.msra.mxu0 0.0
    %1259 = vmatpush.msra.mxu0 0.0
    %1260 = vmatpush.msra.mxu0 0.0
    %1261 = vmatpush.msra.mxu0 %v1112
    %1262 = vmatpush.msra.mxu0 %v1100
    %1263 = vmatpush.msra.mxu0 %v1088
    %1264 = vmatpush.msra.mxu0 %v1076
    %1265 = vmatpush.msra.mxu0 %v1064
    %1266 = vmatpush.msra.mxu0 %v1052
    %1267 = vmatmul.f32.gmra.mxu0 %v1149
    %v1268 = vpop.f32.mrf.mxu0
    %v1269 = vadd.f32 %v1129, %v1268
    %1270 = vdwg.mxu0
    %1271 = vmatpush.msra.mxu0 0.0
    %1272 = vmatpush.msra.mxu0 0.0
    %1273 = vmatpush.msra.mxu0 0.0
    %1274 = vmatpush.msra.mxu0 0.0
    %1275 = vmatpush.msra.mxu0 0.0
    %1276 = vmatpush.msra.mxu0 0.0
    %1277 = vmatpush.msra.mxu0 0.0
    %1278 = vmatpush.msra.mxu0 0.0
    %1279 = vmatpush.msra.mxu0 0.0
    %1280 = vmatpush.msra.mxu0 0.0
    %1281 = vmatpush.msra.mxu0 %v1113
    %1282 = vmatpush.msra.mxu0 %v1101
    %1283 = vmatpush.msra.mxu0 %v1089
    %1284 = vmatpush.msra.mxu0 %v1077
    %1285 = vmatpush.msra.mxu0 %v1065
    %1286 = vmatpush.msra.mxu0 %v1053
    %1287 = vmatmul.f32.gmra.mxu0 %v1149
    %v1288 = vpop.f32.mrf.mxu0
    %v1289 = vadd.f32 %v1130, %v1288
    %1290 = vdwg.mxu0
    %1291 = vmatpush.msra.mxu0 0.0
    %1292 = vmatpush.msra.mxu0 0.0
    %1293 = vmatpush.msra.mxu0 0.0
    %1294 = vmatpush.msra.mxu0 0.0
    %1295 = vmatpush.msra.mxu0 0.0
    %1296 = vmatpush.msra.mxu0 0.0
    %1297 = vmatpush.msra.mxu0 0.0
    %1298 = vmatpush.msra.mxu0 0.0
    %1299 = vmatpush.msra.mxu0 0.0
    %1300 = vmatpush.msra.mxu0 0.0
    %1301 = vmatpush.msra.mxu0 %v1114
    %1302 = vmatpush.msra.mxu0 %v1102
    %1303 = vmatpush.msra.mxu0 %v1090
    %1304 = vmatpush.msra.mxu0 %v1078
    %1305 = vmatpush.msra.mxu0 %v1066
    %1306 = vmatpush.msra.mxu0 %v1054
    %1307 = vmatmul.f32.gmra.mxu0 %v1149
    %v1308 = vpop.f32.mrf.mxu0
    %v1309 = vadd.f32 %v1131, %v1308
    %1310 = vdwg.mxu0
    %1311 = vmatpush.msra.mxu0 0.0
    %1312 = vmatpush.msra.mxu0 0.0
    %1313 = vmatpush.msra.mxu0 0.0
    %1314 = vmatpush.msra.mxu0 0.0
    %1315 = vmatpush.msra.mxu0 0.0
    %1316 = vmatpush.msra.mxu0 0.0
    %1317 = vmatpush.msra.mxu0 0.0
    %1318 = vmatpush.msra.mxu0 0.0
    %1319 = vmatpush.msra.mxu0 0.0
    %1320 = vmatpush.msra.mxu0 0.0
    %1321 = vmatpush.msra.mxu0 %v1115
    %1322 = vmatpush.msra.mxu0 %v1103
    %1323 = vmatpush.msra.mxu0 %v1091
    %1324 = vmatpush.msra.mxu0 %v1079
    %1325 = vmatpush.msra.mxu0 %v1067
    %1326 = vmatpush.msra.mxu0 %v1055
    %1327 = vmatmul.f32.gmra.mxu0 %v1149
    %v1328 = vpop.f32.mrf.mxu0
    %v1329 = vadd.f32 %v1132, %v1328
    %1330 = vdwg.mxu0
    %1331 = vmatpush.msra.mxu0 0.0
    %1332 = vmatpush.msra.mxu0 0.0
    %1333 = vmatpush.msra.mxu0 0.0
    %1334 = vmatpush.msra.mxu0 0.0
    %1335 = vmatpush.msra.mxu0 0.0
    %1336 = vmatpush.msra.mxu0 0.0
    %1337 = vmatpush.msra.mxu0 0.0
    %1338 = vmatpush.msra.mxu0 0.0
    %1339 = vmatpush.msra.mxu0 0.0
    %1340 = vmatpush.msra.mxu0 0.0
    %1341 = vmatpush.msra.mxu0 %v1116
    %1342 = vmatpush.msra.mxu0 %v1104
    %1343 = vmatpush.msra.mxu0 %v1092
    %1344 = vmatpush.msra.mxu0 %v1080
    %1345 = vmatpush.msra.mxu0 %v1068
    %1346 = vmatpush.msra.mxu0 %v1056
    %1347 = vmatmul.f32.gmra.mxu0 %v1149
    %v1348 = vpop.f32.mrf.mxu0
    %v1349 = vadd.f32 %v1133, %v1348
    %1350 = vdwg.mxu0
    %1351 = vmatpush.msra.mxu0 0.0
    %1352 = vmatpush.msra.mxu0 0.0
    %1353 = vmatpush.msra.mxu0 0.0
    %1354 = vmatpush.msra.mxu0 0.0
    %1355 = vmatpush.msra.mxu0 0.0
    %1356 = vmatpush.msra.mxu0 0.0
    %1357 = vmatpush.msra.mxu0 0.0
    %1358 = vmatpush.msra.mxu0 0.0
    %1359 = vmatpush.msra.mxu0 0.0
    %1360 = vmatpush.msra.mxu0 0.0
    %1361 = vmatpush.msra.mxu0 %v1117
    %1362 = vmatpush.msra.mxu0 %v1105
    %1363 = vmatpush.msra.mxu0 %v1093
    %1364 = vmatpush.msra.mxu0 %v1081
    %1365 = vmatpush.msra.mxu0 %v1069
    %1366 = vmatpush.msra.mxu0 %v1057
    %1367 = vmatmul.f32.gmra.mxu0 %v1149
    %v1368 = vpop.f32.mrf.mxu0
    %v1369 = vadd.f32 %v1134, %v1368
    %1370 = vdwg.mxu0
    %1371 = vmatpush.msra.mxu0 0.0
    %1372 = vmatpush.msra.mxu0 0.0
    %1373 = vmatpush.msra.mxu0 0.0
    %1374 = vmatpush.msra.mxu0 0.0
    %1375 = vmatpush.msra.mxu0 0.0
    %1376 = vmatpush.msra.mxu0 0.0
    %1377 = vmatpush.msra.mxu0 0.0
    %1378 = vmatpush.msra.mxu0 0.0
    %1379 = vmatpush.msra.mxu0 0.0
    %1380 = vmatpush.msra.mxu0 0.0
    %1381 = vmatpush.msra.mxu0 %v1118
    %1382 = vmatpush.msra.mxu0 %v1106
    %1383 = vmatpush.msra.mxu0 %v1094
    %1384 = vmatpush.msra.mxu0 %v1082
    %1385 = vmatpush.msra.mxu0 %v1070
    %1386 = vmatpush.msra.mxu0 %v1058
    %1387 = vmatmul.f32.gmra.mxu0 %v1149
    %v1388 = vpop.f32.mrf.mxu0
    %v1389 = vadd.f32 %v1135, %v1388
    %1390 = vdwg.mxu0
    %v1391 = vmul.f32 %v1169, 0.28867513
    %1392 = vmatpush.xpose.msra.mxu0 0.0
    %1393 = vmatpush.xpose.msra.mxu0 0.0
    %1394 = vmatpush.xpose.msra.mxu0 0.0
    %1395 = vmatpush.xpose.msra.mxu0 0.0
    %1396 = vmatpush.xpose.msra.mxu0 0.0
    %1397 = vmatpush.xpose.msra.mxu0 0.0
    %1398 = vmatpush.xpose.msra.mxu0 0.0
    %1399 = vmatpush.xpose.msra.mxu0 0.0
    %1400 = vmatpush.xpose.msra.mxu0 0.0
    %1401 = vmatpush.xpose.msra.mxu0 0.0
    %1402 = vmatpush.xpose.msra.mxu0 0.0
    %1403 = vmatpush.xpose.msra.mxu0 0.0
    %1404 = vmatpush.xpose.msra.mxu0 0.0
    %1405 = vmatpush.xpose.msra.mxu0 0.0
    %1406 = vmatpush.xpose.msra.mxu0 0.0
    %1407 = vmatpush.xpose.msra.mxu0 %v1249
    %1408 = vmatmul.f32.gmra.mxu0 %v1391
    %v1409 = vpop.f32.mrf.mxu0
    %v1410 = vadd.f32 0.0, %v1409
    %1411 = vdwg.mxu0
    %v1412 = vsel %vm523, %v1410, -inf
    %1413 = vmax.xlane.f32.xlu0 %v1412
    %v1414 = vpop.xlane.xlu0 %1413
    %v1415 = vsub.f32 %v1410, %v1414
    %v1416 = vmul.f32 %v1415, 1.442695
    %v1417 = vpow.pop %v1416
    %v1418 = vsel %vm523, %v1417, 0.0
    %1419 = vadd.xlane.f32.xlu0 %v1418
    %v1420 = vpop.xlane.xlu0 %1419
    %v1421 = vrcp.pop %v1420
    %v1422 = vmul.f32 %v1417, %v1421
    %v1424 = vsel %vm523, %v1422, 0
    %1426 = vmatpush.msra.mxu0 0.0
    %1427 = vmatpush.msra.mxu0 0.0
    %1428 = vmatpush.msra.mxu0 0.0
    %1429 = vmatpush.msra.mxu0 0.0
    %1430 = vmatpush.msra.mxu0 0.0
    %1431 = vmatpush.msra.mxu0 0.0
    %1432 = vmatpush.msra.mxu0 0.0
    %1433 = vmatpush.msra.mxu0 0.0
    %1434 = vmatpush.msra.mxu0 0.0
    %1435 = vmatpush.msra.mxu0 0.0
    %1436 = vmatpush.msra.mxu0 0.0
    %1437 = vmatpush.msra.mxu0 0.0
    %1438 = vmatpush.msra.mxu0 0.0
    %1439 = vmatpush.msra.mxu0 0.0
    %1440 = vmatpush.msra.mxu0 0.0
    %1441 = vmatpush.msra.mxu0 %v1329
    %1442 = vmatmul.f32.gmra.mxu0 %v1424
    %v1443 = vpop.f32.mrf.mxu0
    %v1444 = vadd.f32 0.0, %v1443
    %1445 = vdwg.mxu0
    %v1446 = vmul.f32 %v1189, 0.28867513
    %1447 = vmatpush.xpose.msra.mxu0 0.0
    %1448 = vmatpush.xpose.msra.mxu0 0.0
    %1449 = vmatpush.xpose.msra.mxu0 0.0
    %1450 = vmatpush.xpose.msra.mxu0 0.0
    %1451 = vmatpush.xpose.msra.mxu0 0.0
    %1452 = vmatpush.xpose.msra.mxu0 0.0
    %1453 = vmatpush.xpose.msra.mxu0 0.0
    %1454 = vmatpush.xpose.msra.mxu0 0.0
    %1455 = vmatpush.xpose.msra.mxu0 0.0
    %1456 = vmatpush.xpose.msra.mxu0 0.0
    %1457 = vmatpush.xpose.msra.mxu0 0.0
    %1458 = vmatpush.xpose.msra.mxu0 0.0
    %1459 = vmatpush.xpose.msra.mxu0 0.0
    %1460 = vmatpush.xpose.msra.mxu0 0.0
    %1461 = vmatpush.xpose.msra.mxu0 0.0
    %1462 = vmatpush.xpose.msra.mxu0 %v1269
    %1463 = vmatmul.f32.gmra.mxu0 %v1446
    %v1464 = vpop.f32.mrf.mxu0
    %v1465 = vadd.f32 0.0, %v1464
    %1466 = vdwg.mxu0
    %v1467 = vsel %vm523, %v1465, -inf
    %1468 = vmax.xlane.f32.xlu0 %v1467
    %v1469 = vpop.xlane.xlu0 %1468
    %v1470 = vsub.f32 %v1465, %v1469
    %v1471 = vmul.f32 %v1470, 1.442695
    %v1472 = vpow.pop %v1471
    %v1473 = vsel %vm523, %v1472, 0.0
    %1474 = vadd.xlane.f32.xlu0 %v1473
    %v1475 = vpop.xlane.xlu0 %1474
    %v1476 = vrcp.pop %v1475
    %v1477 = vmul.f32 %v1472, %v1476
    %v1479 = vsel %vm523, %v1477, 0
    %1481 = vmatpush.msra.mxu0 0.0
    %1482 = vmatpush.msra.mxu0 0.0
    %1483 = vmatpush.msra.mxu0 0.0
    %1484 = vmatpush.msra.mxu0 0.0
    %1485 = vmatpush.msra.mxu0 0.0
    %1486 = vmatpush.msra.mxu0 0.0
    %1487 = vmatpush.msra.mxu0 0.0
    %1488 = vmatpush.msra.mxu0 0.0
    %1489 = vmatpush.msra.mxu0 0.0
    %1490 = vmatpush.msra.mxu0 0.0
    %1491 = vmatpush.msra.mxu0 0.0
    %1492 = vmatpush.msra.mxu0 0.0
    %1493 = vmatpush.msra.mxu0 0.0
    %1494 = vmatpush.msra.mxu0 0.0
    %1495 = vmatpush.msra.mxu0 0.0
    %1496 = vmatpush.msra.mxu0 %v1349
    %1497 = vmatmul.f32.gmra.mxu0 %v1479
    %v1498 = vpop.f32.mrf.mxu0
    %v1499 = vadd.f32 0.0, %v1498
    %1500 = vdwg.mxu0
    %v1501 = vmul.f32 %v1209, 0.28867513
    %1502 = vmatpush.xpose.msra.mxu0 0.0
    %1503 = vmatpush.xpose.msra.mxu0 0.0
    %1504 = vmatpush.xpose.msra.mxu0 0.0
    %1505 = vmatpush.xpose.msra.mxu0 0.0
    %1506 = vmatpush.xpose.msra.mxu0 0.0
    %1507 = vmatpush.xpose.msra.mxu0 0.0
    %1508 = vmatpush.xpose.msra.mxu0 0.0
    %1509 = vmatpush.xpose.msra.mxu0 0.0
    %1510 = vmatpush.xpose.msra.mxu0 0.0
    %1511 = vmatpush.xpose.msra.mxu0 0.0
    %1512 = vmatpush.xpose.msra.mxu0 0.0
    %1513 = vmatpush.xpose.msra.mxu0 0.0
    %1514 = vmatpush.xpose.msra.mxu0 0.0
    %1515 = vmatpush.xpose.msra.mxu0 0.0
    %1516 = vmatpush.xpose.msra.mxu0 0.0
    %1517 = vmatpush.xpose.msra.mxu0 %v1289
    %1518 = vmatmul.f32.gmra.mxu0 %v1501
    %v1519 = vpop.f32.mrf.mxu0
    %v1520 = vadd.f32 0.0, %v1519
    %1521 = vdwg.mxu0
    %v1522 = vsel %vm523, %v1520, -inf
    %1523 = vmax.xlane.f32.xlu0 %v1522
    %v1524 = vpop.xlane.xlu0 %1523
    %v1525 = vsub.f32 %v1520, %v1524
    %v1526 = vmul.f32 %v1525, 1.442695
    %v1527 = vpow.pop %v1526
    %v1528 = vsel %vm523, %v1527, 0.0
    %1529 = vadd.xlane.f32.xlu0 %v1528
    %v1530 = vpop.xlane.xlu0 %1529
    %v1531 = vrcp.pop %v1530
    %v1532 = vmul.f32 %v1527, %v1531
    %v1534 = vsel %vm523, %v1532, 0
    %1536 = vmatpush.msra.mxu0 0.0
    %1537 = vmatpush.msra.mxu0 0.0
    %1538 = vmatpush.msra.mxu0 0.0
    %1539 = vmatpush.msra.mxu0 0.0
    %1540 = vmatpush.msra.mxu0 0.0
    %1541 = vmatpush.msra.mxu0 0.0
    %1542 = vmatpush.msra.mxu0 0.0
    %1543 = vmatpush.msra.mxu0 0.0
    %1544 = vmatpush.msra.mxu0 0.0
    %1545 = vmatpush.msra.mxu0 0.0
    %1546 = vmatpush.msra.mxu0 0.0
    %1547 = vmatpush.msra.mxu0 0.0
    %1548 = vmatpush.msra.mxu0 0.0
    %1549 = vmatpush.msra.mxu0 0.0
    %1550 = vmatpush.msra.mxu0 0.0
    %1551 = vmatpush.msra.mxu0 %v1369
    %1552 = vmatmul.f32.gmra.mxu0 %v1534
    %v1553 = vpop.f32.mrf.mxu0
    %v1554 = vadd.f32 0.0, %v1553
    %1555 = vdwg.mxu0
    %v1556 = vmul.f32 %v1229, 0.28867513
    %1557 = vmatpush.xpose.msra.mxu0 0.0
    %1558 = vmatpush.xpose.msra.mxu0 0.0
    %1559 = vmatpush.xpose.msra.mxu0 0.0
    %1560 = vmatpush.xpose.msra.mxu0 0.0
    %1561 = vmatpush.xpose.msra.mxu0 0.0
    %1562 = vmatpush.xpose.msra.mxu0 0.0
    %1563 = vmatpush.xpose.msra.mxu0 0.0
    %1564 = vmatpush.xpose.msra.mxu0 0.0
    %1565 = vmatpush.xpose.msra.mxu0 0.0
    %1566 = vmatpush.xpose.msra.mxu0 0.0
    %1567 = vmatpush.xpose.msra.mxu0 0.0
    %1568 = vmatpush.xpose.msra.mxu0 0.0
    %1569 = vmatpush.xpose.msra.mxu0 0.0
    %1570 = vmatpush.xpose.msra.mxu0 0.0
    %1571 = vmatpush.xpose.msra.mxu0 0.0
    %1572 = vmatpush.xpose.msra.mxu0 %v1309
    %1573 = vmatmul.f32.gmra.mxu0 %v1556
    %v1574 = vpop.f32.mrf.mxu0
    %v1575 = vadd.f32 0.0, %v1574
    %1576 = vdwg.mxu0
    %v1577 = vsel %vm523, %v1575, -inf
    %1578 = vmax.xlane.f32.xlu0 %v1577
    %v1579 = vpop.xlane.xlu0 %1578
    %v1580 = vsub.f32 %v1575, %v1579
    %v1581 = vmul.f32 %v1580, 1.442695
    %v1582 = vpow.pop %v1581
    %v1583 = vsel %vm523, %v1582, 0.0
    %1584 = vadd.xlane.f32.xlu0 %v1583
    %v1585 = vpop.xlane.xlu0 %1584
    %v1586 = vrcp.pop %v1585
    %v1587 = vmul.f32 %v1582, %v1586
    %v1589 = vsel %vm523, %v1587, 0
    %1591 = vmatpush.msra.mxu0 0.0
    %1592 = vmatpush.msra.mxu0 0.0
    %1593 = vmatpush.msra.mxu0 0.0
    %1594 = vmatpush.msra.mxu0 0.0
    %1595 = vmatpush.msra.mxu0 0.0
    %1596 = vmatpush.msra.mxu0 0.0
    %1597 = vmatpush.msra.mxu0 0.0
    %1598 = vmatpush.msra.mxu0 0.0
    %1599 = vmatpush.msra.mxu0 0.0
    %1600 = vmatpush.msra.mxu0 0.0
    %1601 = vmatpush.msra.mxu0 0.0
    %1602 = vmatpush.msra.mxu0 0.0
    %1603 = vmatpush.msra.mxu0 0.0
    %1604 = vmatpush.msra.mxu0 0.0
    %1605 = vmatpush.msra.mxu0 0.0
    %1606 = vmatpush.msra.mxu0 %v1389
    %1607 = vmatmul.f32.gmra.mxu0 %v1589
    %v1608 = vpop.f32.mrf.mxu0
    %v1609 = vadd.f32 0.0, %v1608
    %1610 = vdwg.mxu0
    %s1611 = scalar_lea.vmem %s8, 512
    %v1612 = vld [vmem:[%s1611] sm:$0xff]
    %v1613 = vld [vmem:[%s1611 + $0x8] sm:$0xff]
    %v1614 = vld [vmem:[%s1611 + $0x10] sm:$0xff]
    %v1615 = vld [vmem:[%s1611 + $0x18] sm:$0xff]
    %v1616 = vld [vmem:[%s1611 + $0x20] sm:$0xff]
    %v1617 = vld [vmem:[%s1611 + $0x28] sm:$0xff]
    %v1618 = vld [vmem:[%s1611 + $0x30] sm:$0xff]
    %v1619 = vld [vmem:[%s1611 + $0x38] sm:$0xff]
    %v1620 = vld [vmem:[%s1611 + $0x40] sm:$0xff]
    %v1621 = vld [vmem:[%s1611 + $0x48] sm:$0xff]
    %v1622 = vld [vmem:[%s1611 + $0x50] sm:$0xff]
    %v1623 = vld [vmem:[%s1611 + $0x58] sm:$0xff]
    %v1624 = vld [vmem:[%s1611 + $0x60] sm:$0xff]
    %v1625 = vld [vmem:[%s1611 + $0x68] sm:$0xff]
    %v1626 = vld [vmem:[%s1611 + $0x70] sm:$0xff]
    %v1627 = vld [vmem:[%s1611 + $0x78] sm:$0xff]
    %v1628 = vld [vmem:[%s1611 + $0x80] sm:$0xff]
    %v1629 = vld [vmem:[%s1611 + $0x88] sm:$0xff]
    %v1630 = vld [vmem:[%s1611 + $0x90] sm:$0xff]
    %v1631 = vld [vmem:[%s1611 + $0x98] sm:$0xff]
    %v1632 = vld [vmem:[%s1611 + $0xa0] sm:$0xff]
    %v1633 = vld [vmem:[%s1611 + $0xa8] sm:$0xff]
    %v1634 = vld [vmem:[%s1611 + $0xb0] sm:$0xff]
    %v1635 = vld [vmem:[%s1611 + $0xb8] sm:$0xff]
    %v1636 = vld [vmem:[%s1611 + $0xc0] sm:$0xff]
    %v1637 = vld [vmem:[%s1611 + $0xc8] sm:$0xff]
    %v1638 = vld [vmem:[%s1611 + $0xd0] sm:$0xff]
    %v1639 = vld [vmem:[%s1611 + $0xd8] sm:$0xff]
    %v1640 = vld [vmem:[%s1611 + $0xe0] sm:$0xff]
    %v1641 = vld [vmem:[%s1611 + $0xe8] sm:$0xff]
    %v1642 = vld [vmem:[%s1611 + $0xf0] sm:$0xff]
    %v1643 = vld [vmem:[%s1611 + $0xf8] sm:$0xff]
    %v1644 = vld [vmem:[%s1611 + $0x100] sm:$0xff]
    %v1645 = vld [vmem:[%s1611 + $0x108] sm:$0xff]
    %v1646 = vld [vmem:[%s1611 + $0x110] sm:$0xff]
    %v1647 = vld [vmem:[%s1611 + $0x118] sm:$0xff]
    %v1648 = vld [vmem:[%s1611 + $0x120] sm:$0xff]
    %v1649 = vld [vmem:[%s1611 + $0x128] sm:$0xff]
    %v1650 = vld [vmem:[%s1611 + $0x130] sm:$0xff]
    %v1651 = vld [vmem:[%s1611 + $0x138] sm:$0xff]
    %v1652 = vld [vmem:[%s1611 + $0x140] sm:$0xff]
    %v1653 = vld [vmem:[%s1611 + $0x148] sm:$0xff]
    %v1654 = vld [vmem:[%s1611 + $0x150] sm:$0xff]
    %v1655 = vld [vmem:[%s1611 + $0x158] sm:$0xff]
    %v1656 = vld [vmem:[%s1611 + $0x160] sm:$0xff]
    %v1657 = vld [vmem:[%s1611 + $0x168] sm:$0xff]
    %v1658 = vld [vmem:[%s1611 + $0x170] sm:$0xff]
    %v1659 = vld [vmem:[%s1611 + $0x178] sm:$0xff]
    %v1660 = vld [vmem:[%s1611 + $0x180] sm:$0xff]
    %v1661 = vld [vmem:[%s1611 + $0x188] sm:$0xff]
    %v1662 = vld [vmem:[%s1611 + $0x190] sm:$0xff]
    %v1663 = vld [vmem:[%s1611 + $0x198] sm:$0xff]
    %v1664 = vld [vmem:[%s1611 + $0x1a0] sm:$0xff]
    %v1665 = vld [vmem:[%s1611 + $0x1a8] sm:$0xff]
    %v1666 = vld [vmem:[%s1611 + $0x1b0] sm:$0xff]
    %v1667 = vld [vmem:[%s1611 + $0x1b8] sm:$0xff]
    %v1668 = vld [vmem:[%s1611 + $0x1c0] sm:$0xff]
    %v1669 = vld [vmem:[%s1611 + $0x1c8] sm:$0xff]
    %v1670 = vld [vmem:[%s1611 + $0x1d0] sm:$0xff]
    %v1671 = vld [vmem:[%s1611 + $0x1d8] sm:$0xff]
    %v1672 = vld [vmem:[%s1611 + $0x1e0] sm:$0xff]
    %v1673 = vld [vmem:[%s1611 + $0x1e8] sm:$0xff]
    %v1674 = vld [vmem:[%s1611 + $0x1f0] sm:$0xff]
    %v1675 = vld [vmem:[%s1611 + $0x1f8] sm:$0xff]
    %s1676 = scalar_lea.vmem %s9, 1
    %v1677 = vld [vmem:[%s1676] sm:$0x1]
    %v1679 = vperm.slane %v1677, 0
    %1681 = vmatpush.msra.mxu0 %v1627
    %1682 = vmatpush.msra.mxu0 %v1626
    %1683 = vmatpush.msra.mxu0 %v1625
    %1684 = vmatpush.msra.mxu0 %v1624
    %1685 = vmatpush.msra.mxu0 %v1623
    %1686 = vmatpush.msra.mxu0 %v1622
    %1687 = vmatpush.msra.mxu0 %v1621
    %1688 = vmatpush.msra.mxu0 %v1620
    %1689 = vmatpush.msra.mxu0 %v1619
    %1690 = vmatpush.msra.mxu0 %v1618
    %1691 = vmatpush.msra.mxu0 %v1617
    %1692 = vmatpush.msra.mxu0 %v1616
    %1693 = vmatpush.msra.mxu0 %v1615
    %1694 = vmatpush.msra.mxu0 %v1614
    %1695 = vmatpush.msra.mxu0 %v1613
    %1696 = vmatpush.msra.mxu0 %v1612
    %1697 = vmatmul.f32.gmra.mxu0 %v1444
    %v1698 = vpop.f32.mrf.mxu0
    %v1699 = vadd.f32 %v1679, %v1698
    %1700 = vdwg.mxu0
    %1701 = vmatpush.msra.mxu0 %v1643
    %1702 = vmatpush.msra.mxu0 %v1642
    %1703 = vmatpush.msra.mxu0 %v1641
    %1704 = vmatpush.msra.mxu0 %v1640
    %1705 = vmatpush.msra.mxu0 %v1639
    %1706 = vmatpush.msra.mxu0 %v1638
    %1707 = vmatpush.msra.mxu0 %v1637
    %1708 = vmatpush.msra.mxu0 %v1636
    %1709 = vmatpush.msra.mxu0 %v1635
    %1710 = vmatpush.msra.mxu0 %v1634
    %1711 = vmatpush.msra.mxu0 %v1633
    %1712 = vmatpush.msra.mxu0 %v1632
    %1713 = vmatpush.msra.mxu0 %v1631
    %1714 = vmatpush.msra.mxu0 %v1630
    %1715 = vmatpush.msra.mxu0 %v1629
    %1716 = vmatpush.msra.mxu0 %v1628
    %1717 = vmatmul.f32.gmra.mxu0 %v1499
    %v1718 = vpop.f32.mrf.mxu0
    %v1719 = vadd.f32 %v1699, %v1718
    %1720 = vdwg.mxu0
    %1721 = vmatpush.msra.mxu0 %v1659
    %1722 = vmatpush.msra.mxu0 %v1658
    %1723 = vmatpush.msra.mxu0 %v1657
    %1724 = vmatpush.msra.mxu0 %v1656
    %1725 = vmatpush.msra.mxu0 %v1655
    %1726 = vmatpush.msra.mxu0 %v1654
    %1727 = vmatpush.msra.mxu0 %v1653
    %1728 = vmatpush.msra.mxu0 %v1652
    %1729 = vmatpush.msra.mxu0 %v1651
    %1730 = vmatpush.msra.mxu0 %v1650
    %1731 = vmatpush.msra.mxu0 %v1649
    %1732 = vmatpush.msra.mxu0 %v1648
    %1733 = vmatpush.msra.mxu0 %v1647
    %1734 = vmatpush.msra.mxu0 %v1646
    %1735 = vmatpush.msra.mxu0 %v1645
    %1736 = vmatpush.msra.mxu0 %v1644
    %1737 = vmatmul.f32.gmra.mxu0 %v1554
    %v1738 = vpop.f32.mrf.mxu0
    %v1739 = vadd.f32 %v1719, %v1738
    %1740 = vdwg.mxu0
    %1741 = vmatpush.msra.mxu0 %v1675
    %1742 = vmatpush.msra.mxu0 %v1674
    %1743 = vmatpush.msra.mxu0 %v1673
    %1744 = vmatpush.msra.mxu0 %v1672
    %1745 = vmatpush.msra.mxu0 %v1671
    %1746 = vmatpush.msra.mxu0 %v1670
    %1747 = vmatpush.msra.mxu0 %v1669
    %1748 = vmatpush.msra.mxu0 %v1668
    %1749 = vmatpush.msra.mxu0 %v1667
    %1750 = vmatpush.msra.mxu0 %v1666
    %1751 = vmatpush.msra.mxu0 %v1665
    %1752 = vmatpush.msra.mxu0 %v1664
    %1753 = vmatpush.msra.mxu0 %v1663
    %1754 = vmatpush.msra.mxu0 %v1662
    %1755 = vmatpush.msra.mxu0 %v1661
    %1756 = vmatpush.msra.mxu0 %v1660
    %1757 = vmatmul.f32.gmra.mxu0 %v1609
    %v1758 = vpop.f32.mrf.mxu0
    %v1759 = vadd.f32 %v1739, %v1758
    %1760 = vdwg.mxu0
    %v1761 = vadd.f32 %v1045, %v1759
    %s1762 = scalar_lea.vmem %s14, 1
    %v1763 = vld [vmem:[%s1762] sm:$0x1]
    %s1764 = scalar_lea.vmem %s15, 1
    %v1765 = vld [vmem:[%s1764] sm:$0x1]
    %v1766 = vsel %vm258, %v1761, 0.0
    %1767 = vadd.xlane.f32.xlu0 %v1766
    %v1768 = vpop.xlane.xlu0 %1767
    %v1769 = vmul.f32 %v1768, %v883
    %v1770 = vsub.f32 %v1761, %v1769
    %v1771 = vmul.f32 %v1770, %v1770
    %v1772 = vsel %vm258, %v1771, 0.0
    %1773 = vadd.xlane.f32.xlu0 %v1772
    %v1774 = vpop.xlane.xlu0 %1773
    %v1775 = vmul.f32 %v1774, %v883
    %v1776 = vadd.f32 %v1775, 1e-05
    %v1777 = vrsqrt.pop %v1776
    %v1778 = vmul.f32 %v1777, %v1776
    %v1779 = vmul.f32 %v1778, %v1777
    %v1780 = vmul.f32 0.5, %v1779
    %v1781 = vsub.f32 1.5, %v1780
    %v1782 = vmul.f32 %v1777, %v1781
    %vm1783 = vweird.f32 %v1776
    %vm1784 = vweird.f32 %v1777
    %vm1785 = vmor %vm1783, %vm1784
    %v1786 = vsel %vm1785, %v1777, %v1782
    %v1787 = vmul.f32 %v1770, %v1786
    %v1789 = vperm.slane %v1763, 0
    %v1791 = vmul.f32 %v1787, %v1789
    %v1793 = vperm.slane %v1765, 0
    %v1795 = vadd.f32 %v1791, %v1793
    %s1796 = scalar_lea.vmem %s10, 48
    %v1797 = vld [vmem:[%s1796] sm:$0xff]
    %v1798 = vld [vmem:[%s1796 + $0x8] sm:$0xff]
    %v1799 = vld [vmem:[%s1796 + $0x10] sm:$0xff]
    %v1800 = vld [vmem:[%s1796 + $0x18] sm:$0xff]
    %v1801 = vld [vmem:[%s1796 + $0x20] sm:$0xff]
    %v1802 = vld [vmem:[%s1796 + $0x28] sm:$0xff]
    %s1803 = scalar_lea.vmem %s11, 1
    %v1804 = vld [vmem:[%s1803] sm:$0x1]
    %v1806 = vperm.slane %v1804, 0
    %v1809 = vsel %vm258, %v1795, 0
    %1811 = vmatpush.msra.mxu0 0.0
    %1812 = vmatpush.msra.mxu0 0.0
    %1813 = vmatpush.msra.mxu0 0.0
    %1814 = vmatpush.msra.mxu0 0.0
    %1815 = vmatpush.msra.mxu0 0.0
    %1816 = vmatpush.msra.mxu0 0.0
    %1817 = vmatpush.msra.mxu0 0.0
    %1818 = vmatpush.msra.mxu0 0.0
    %1819 = vmatpush.msra.mxu0 0.0
    %1820 = vmatpush.msra.mxu0 0.0
    %1821 = vmatpush.msra.mxu0 %v1802
    %1822 = vmatpush.msra.mxu0 %v1801
    %1823 = vmatpush.msra.mxu0 %v1800
    %1824 = vmatpush.msra.mxu0 %v1799
    %1825 = vmatpush.msra.mxu0 %v1798
    %1826 = vmatpush.msra.mxu0 %v1797
    %1827 = vmatmul.f32.gmra.mxu0 %v1809
    %v1828 = vpop.f32.mrf.mxu0
    %v1829 = vadd.f32 %v1806, %v1828
    %1830 = vdwg.mxu0
    %v1831 = vmax.f32 %v1829, 0.0
    %s1832 = scalar_lea.vmem %s12, 48
    %v1833 = vld [vmem:[%s1832] sm:$0xff]
    %v1834 = vld [vmem:[%s1832 + $0x8] sm:$0xff]
    %v1835 = vld [vmem:[%s1832 + $0x10] sm:$0xff]
    %v1836 = vld [vmem:[%s1832 + $0x18] sm:$0xff]
    %v1837 = vld [vmem:[%s1832 + $0x20] sm:$0xff]
    %v1838 = vld [vmem:[%s1832 + $0x28] sm:$0xff]
    %s1839 = scalar_lea.vmem %s13, 1
    %v1840 = vld [vmem:[%s1839] sm:$0x1]
    %v1842 = vperm.slane %v1840, 0
    %v1845 = vsel %vm258, %v1831, 0
    %1847 = vmatpush.msra.mxu0 0.0
    %1848 = vmatpush.msra.mxu0 0.0
    %1849 = vmatpush.msra.mxu0 0.0
    %1850 = vmatpush.msra.mxu0 0.0
    %1851 = vmatpush.msra.mxu0 0.0
    %1852 = vmatpush.msra.mxu0 0.0
    %1853 = vmatpush.msra.mxu0 0.0
    %1854 = vmatpush.msra.mxu0 0.0
    %1855 = vmatpush.msra.mxu0 0.0
    %1856 = vmatpush.msra.mxu0 0.0
    %1857 = vmatpush.msra.mxu0 %v1838
    %1858 = vmatpush.msra.mxu0 %v1837
    %1859 = vmatpush.msra.mxu0 %v1836
    %1860 = vmatpush.msra.mxu0 %v1835
    %1861 = vmatpush.msra.mxu0 %v1834
    %1862 = vmatpush.msra.mxu0 %v1833
    %1863 = vmatmul.f32.gmra.mxu0 %v1845
    %v1864 = vpop.f32.mrf.mxu0
    %v1865 = vadd.f32 %v1842, %v1864
    %1866 = vdwg.mxu0
    %v1867 = vadd.f32 %v1795, %v1865
    %s1868 = scalar_lea.vmem %s16, 1
    %v1869 = vld [vmem:[%s1868] sm:$0x1]
    %s1870 = scalar_lea.vmem %s17, 1
    %v1871 = vld [vmem:[%s1870] sm:$0x1]
    %v1872 = vsel %vm258, %v1867, 0.0
    %1873 = vadd.xlane.f32.xlu0 %v1872
    %v1874 = vpop.xlane.xlu0 %1873
    %v1875 = vmul.f32 %v1874, %v883
    %v1876 = vsub.f32 %v1867, %v1875
    %v1877 = vmul.f32 %v1876, %v1876
    %v1878 = vsel %vm258, %v1877, 0.0
    %1879 = vadd.xlane.f32.xlu0 %v1878
    %v1880 = vpop.xlane.xlu0 %1879
    %v1881 = vmul.f32 %v1880, %v883
    %v1882 = vadd.f32 %v1881, 1e-05
    %v1883 = vrsqrt.pop %v1882
    %v1884 = vmul.f32 %v1883, %v1882
    %v1885 = vmul.f32 %v1884, %v1883
    %v1886 = vmul.f32 0.5, %v1885
    %v1887 = vsub.f32 1.5, %v1886
    %v1888 = vmul.f32 %v1883, %v1887
    %vm1889 = vweird.f32 %v1882
    %vm1890 = vweird.f32 %v1883
    %vm1891 = vmor %vm1889, %vm1890
    %v1892 = vsel %vm1891, %v1883, %v1888
    %v1893 = vmul.f32 %v1876, %v1892
    %v1895 = vperm.slane %v1869, 0
    %v1897 = vmul.f32 %v1893, %v1895
    %v1899 = vperm.slane %v1871, 0
    %v1901 = vadd.f32 %v1897, %v1899
    %s1902 = scalar_lea.vmem %s18, 48
    %v1903 = vld [vmem:[%s1902] sm:$0xff]
    %v1904 = vld [vmem:[%s1902 + $0x8] sm:$0xff]
    %v1905 = vld [vmem:[%s1902 + $0x10] sm:$0xff]
    %v1906 = vld [vmem:[%s1902 + $0x18] sm:$0xff]
    %v1907 = vld [vmem:[%s1902 + $0x20] sm:$0xff]
    %v1908 = vld [vmem:[%s1902 + $0x28] sm:$0xff]
    %s1909 = scalar_lea.vmem %s19, 1
    %v1910 = vld [vmem:[%s1909] sm:$0x1]
    %v1912 = vperm.slane %v1910, 0
    %v1915 = vsel %vm258, %v1901, 0
    %1917 = vmatpush.msra.mxu0 0.0
    %1918 = vmatpush.msra.mxu0 0.0
    %1919 = vmatpush.msra.mxu0 0.0
    %1920 = vmatpush.msra.mxu0 0.0
    %1921 = vmatpush.msra.mxu0 0.0
    %1922 = vmatpush.msra.mxu0 0.0
    %1923 = vmatpush.msra.mxu0 0.0
    %1924 = vmatpush.msra.mxu0 0.0
    %1925 = vmatpush.msra.mxu0 0.0
    %1926 = vmatpush.msra.mxu0 0.0
    %1927 = vmatpush.msra.mxu0 %v1908
    %1928 = vmatpush.msra.mxu0 %v1907
    %1929 = vmatpush.msra.mxu0 %v1906
    %1930 = vmatpush.msra.mxu0 %v1905
    %1931 = vmatpush.msra.mxu0 %v1904
    %1932 = vmatpush.msra.mxu0 %v1903
    %1933 = vmatmul.f32.gmra.mxu0 %v1915
    %v1934 = vpop.f32.mrf.mxu0
    %v1935 = vadd.f32 %v1912, %v1934
    %1936 = vdwg.mxu0
    %v1937 = vld [vmem:[%s20] sm:$0xff]
    %v1938 = vld [vmem:[%s20 + $0x8] sm:$0xff]
    %v1939 = vld [vmem:[%s20 + $0x10] sm:$0xff]
    %v1940 = vld [vmem:[%s20 + $0x18] sm:$0xff]
    %v1941 = vld [vmem:[%s21] sm:$0x1]
    %v1943 = vperm.slane %v1941, 0
    %v1946 = vsel %vm125, %v1935, 0
    %1948 = vmatpush.msra.mxu0 0.0
    %1949 = vmatpush.msra.mxu0 0.0
    %1950 = vmatpush.msra.mxu0 0.0
    %1951 = vmatpush.msra.mxu0 0.0
    %1952 = vmatpush.msra.mxu0 0.0
    %1953 = vmatpush.msra.mxu0 0.0
    %1954 = vmatpush.msra.mxu0 0.0
    %1955 = vmatpush.msra.mxu0 0.0
    %1956 = vmatpush.msra.mxu0 0.0
    %1957 = vmatpush.msra.mxu0 0.0
    %1958 = vmatpush.msra.mxu0 0.0
    %1959 = vmatpush.msra.mxu0 0.0
    %1960 = vmatpush.msra.mxu0 %v1940
    %1961 = vmatpush.msra.mxu0 %v1939
    %1962 = vmatpush.msra.mxu0 %v1938
    %1963 = vmatpush.msra.mxu0 %v1937
    %1964 = vmatmul.f32.gmra.mxu0 %v1946
    %v1965 = vpop.f32.mrf.mxu0
    %v1966 = vadd.f32 %v1943, %v1965
    %1967 = vdwg.mxu0
    %v1968 = vmin.f32 %v1966, 0.0
    %v1969 = vmul.f32 %v1968, 1.442695
    %v1970 = vpow.pop %v1969
    %v1971 = vsub.f32 %v1970, 1.0
    %v1972 = vmul.f32 %v1971, 1.6732632
    %vm1973 = vcmp.gt.f32.partialorder %v1966, 0.0
    %v1974 = vsel %vm1973, %v1966, %v1972
    %v1975 = vmul.f32 %v1974, 1.050701
    %v1976 = vld [vmem:[%s22] sm:$0xff]
    %v1977 = vld [vmem:[%s22 + $0x8] sm:$0xff]
    %v1978 = vld [vmem:[%s22 + $0x10] sm:$0xff]
    %v1979 = vld [vmem:[%s22 + $0x18] sm:$0xff]
    %v1980 = vld [vmem:[%s23] sm:$0x1]
    %v1982 = vperm.slane %v1980, 0
    %v1985 = vsel %vm125, %v1975, 0
    %1987 = vmatpush.msra.mxu0 0.0
    %1988 = vmatpush.msra.mxu0 0.0
    %1989 = vmatpush.msra.mxu0 0.0
    %1990 = vmatpush.msra.mxu0 0.0
    %1991 = vmatpush.msra.mxu0 0.0
    %1992 = vmatpush.msra.mxu0 0.0
    %1993 = vmatpush.msra.mxu0 0.0
    %1994 = vmatpush.msra.mxu0 0.0
    %1995 = vmatpush.msra.mxu0 0.0
    %1996 = vmatpush.msra.mxu0 0.0
    %1997 = vmatpush.msra.mxu0 0.0
    %1998 = vmatpush.msra.mxu0 0.0
    %1999 = vmatpush.msra.mxu0 %v1979
    %2000 = vmatpush.msra.mxu0 %v1978
    %2001 = vmatpush.msra.mxu0 %v1977
    %2002 = vmatpush.msra.mxu0 %v1976
    %2003 = vmatmul.f32.gmra.mxu0 %v1985
    %v2004 = vpop.f32.mrf.mxu0
    %v2005 = vadd.f32 %v1982, %v2004
    %2006 = vdwg.mxu0
    %2007 = vst.msk [vmem:[#allocation3] sm:$0xff] %vm85, %v2005
    // Predicated region
    $region98: #{transformer_autoencoder_forward.1} parent=1 // pred_check
      _
    $region99: #{transformer_autoencoder_forward.1} parent=1 // pred_check_branch
      %2009 = sbr.rel (0) target = $region101
    $region100: #{transformer_autoencoder_forward.1} parent=1 // pred_region
      %2011 = vsyncadd [#allocation4], 0
      %s2013 = sshll.u32 [#allocation3], 4
      %s2014 = int_to_ptr.vmem [resolvable:$true] %s2013
      %s2015 = sshll.u32 %s24, 4
      %s2016 = int_to_ptr.hbm [resolvable:$true] %s2015
      %2018 = dma.vmem_to_hbm [thread:$0]  %s2014, 128, %s2016, [#allocation4]
    $region101: #{transformer_autoencoder_forward.1} parent=1 // pred_fallthru
      _
    // Predicated region
    $region102: #{transformer_autoencoder_forward.1} parent=1 // pred_check
      _
    $region103: #{transformer_autoencoder_forward.1} parent=1 // pred_check_branch
      %2020 = sbr.rel (0) target = $region105
    $region104: #{transformer_autoencoder_forward.1} parent=1 // pred_region
      %2022 = dma.done [#allocation4], 128
    $region105: #{transformer_autoencoder_forward.1} parent=1 // pred_fallthru
      _
    %2023 = vsyncpa [#allocation4], 1

</llo_original>
